<compile_context>
chip_gen: v7x
topology: tpu7x:2x2x1
jax: 0.10.0
libtpu: 0.0.40
codegen_flags: <defaults>
</compile_context>

<pallas_src>
import functools
import math

import jax
import jax.numpy as jnp
from jax.experimental import pallas as pl
from jax.experimental.pallas import tpu as pltpu


_VMEM = pl.BlockSpec(memory_space=pltpu.MemorySpace.VMEM)


def _round_up(x, m):
    return (x + m - 1) // m * m


# ----------------------------- Pallas kernels -------------------------------

def _mm_stats_kernel(p_ref, w_ref, y_ref, st_ref, *, m_real, tile_m):
    """Pass 1: bf16 matmul (f32 acc) + per-tile masked partial BN stats."""
    i = pl.program_id(0)
    y = jnp.dot(p_ref[...], w_ref[...], preferred_element_type=jnp.float32)
    y_ref[...] = y
    # Mask rows that came from zero-padding M so BN stats stay exact.
    row = jax.lax.broadcasted_iota(jnp.int32, y.shape, 0) + i * tile_m
    valid = (row < m_real).astype(jnp.float32)
    yv = y * valid
    s = jnp.sum(yv, axis=0, keepdims=True)          # (1, C)  sum
    sq = jnp.sum(yv * y, axis=0, keepdims=True)     # (1, C)  sum of squares
    pad = jnp.zeros((6, y.shape[1]), jnp.float32)   # keep 8 sublanes for alignment
    st_ref[...] = jnp.concatenate([s, sq, pad], axis=0)[None]


def _bn_act_kernel(y_ref, sc_ref, sh_ref, o_ref, *, act, slope=0.2):
    """Pass 2: y*scale + shift (folded BN) + activation, lane-dense store."""
    y = y_ref[...] * sc_ref[...] + sh_ref[...]
    if act == "leaky":
        y = jnp.where(y > 0, y, slope * y)
    o_ref[...] = y.astype(o_ref.dtype)


def _head_kernel(x_ref, w1_ref, g_ref, bt_ref, w2_ref, b2_ref, o_ref,
                 *, n_real, eps):
    """Fused tail: bottleneck conv (4x4->1x1) + BN + Linear(dim,128) + sigmoid."""
    y = jnp.dot(x_ref[...], w1_ref[...], preferred_element_type=jnp.float32)
    row = jax.lax.broadcasted_iota(jnp.int32, y.shape, 0)
    valid = (row < n_real).astype(jnp.float32)
    inv_n = 1.0 / float(n_real)
    mean = jnp.sum(y * valid, axis=0, keepdims=True) * inv_n
    var = jnp.maximum(
        jnp.sum(y * y * valid, axis=0, keepdims=True) * inv_n - mean * mean, 0.0)
    z = (y - mean) * jax.lax.rsqrt(var + eps) * g_ref[...] + bt_ref[...]
    k = jnp.dot(z, w2_ref[...], preferred_element_type=jnp.float32) + b2_ref[...]
    o_ref[...] = jax.nn.sigmoid(k)


# ------------------------------- JAX glue ------------------------------------

def _im2col_nhwc(x, k, stride, pad):
    """(N,H,W,C) NHWC -> (N*OH*OW, k*k*C), column order (ki, kj, c)."""
    x = jnp.pad(x, ((0, 0), (pad, pad), (pad, pad), (0, 0)))
    N, H, W, C = x.shape
    OH = (H - k) // stride + 1
    OW = (W - k) // stride + 1
    cols = []
    for i in range(k):
        for j in range(k):
            cols.append(x[:, i:i + stride * (OH - 1) + 1:stride,
                          j:j + stride * (OW - 1) + 1:stride, :])
    patches = jnp.concatenate(cols, axis=-1)          # (N, OH, OW, k*k*C)
    return patches.reshape(N * OH * OW, k * k * C), (N, OH, OW)


def conv_bn_lrelu(x_nhwc, w, gamma, beta, *, k=4, s=2, p=1,
                  eps=1e-5, slope=0.2):
    """One dcgan_conv layer (Conv2d(4,2,1)+BN(train)+LeakyReLU) -> 2 Pallas passes."""
    cout = w.shape[0]
    patches, (N, OH, OW) = _im2col_nhwc(x_nhwc, k, s, p)
    M, K = patches.shape
    Kp = _round_up(K, 128)
    Cp = _round_up(cout, 128)
    tile_m = min(512, _round_up(M, 8))
    Mp = _round_up(M, tile_m)
    nt = Mp // tile_m

    patches = jnp.pad(patches, ((0, Mp - M), (0, Kp - K))).astype(jnp.bfloat16)
    wmat = jnp.transpose(w, (2, 3, 1, 0)).reshape(K, cout)      # (ki,kj,cin)->rows
    wmat = jnp.pad(wmat, ((0, Kp - K), (0, Cp - cout))).astype(jnp.bfloat16)

    # Pass 1: gridded matmul + per-tile partial stats (M axis stays "parallel").
    # VMEM budget: 2*(tile_m*Kp)*2B + 2*(Kp*Cp)*2B + 2*(tile_m*Cp)*4B  << 32 MiB.
    y, st = pl.pallas_call(
        functools.partial(_mm_stats_kernel, m_real=M, tile_m=tile_m),
        grid=(nt,),
        in_specs=[pl.BlockSpec((tile_m, Kp), lambda i: (i, 0)),
                  pl.BlockSpec((Kp, Cp), lambda i: (0, 0))],
        out_specs=(pl.BlockSpec((tile_m, Cp), lambda i: (i, 0)),
                   pl.BlockSpec((1, 8, Cp), lambda i: (i, 0, 0))),
        out_shape=(jax.ShapeDtypeStruct((Mp, Cp), jnp.float32),
                   jax.ShapeDtypeStruct((nt, 8, Cp), jnp.float32)),
        compiler_params=pltpu.CompilerParams(
            dimension_semantics=("parallel",),
            vmem_limit_bytes=32 * 1024 * 1024),
    )(patches, wmat)

    # Finish the (tiny) BN stat reduction + fold gamma/beta in XLA glue.
    tot = jnp.sum(st, axis=0)                       # (8, Cp); rows 0,1 used
    mean = tot[0] / M
    var = jnp.maximum(tot[1] / M - mean * mean, 0.0)
    gamma_p = jnp.pad(gamma, (0, Cp - cout))
    beta_p = jnp.pad(beta, (0, Cp - cout))
    scale = gamma_p * jax.lax.rsqrt(var + eps)
    shift = beta_p - mean * scale

    # Pass 2: gridded, lane-dense BN-apply + LeakyReLU.
    out = pl.pallas_call(
        functools.partial(_bn_act_kernel, act="leaky", slope=slope),
        grid=(nt,),
        in_specs=[pl.BlockSpec((tile_m, Cp), lambda i: (i, 0)),
                  pl.BlockSpec((1, Cp), lambda i: (0, 0)),
                  pl.BlockSpec((1, Cp), lambda i: (0, 0))],
        out_specs=pl.BlockSpec((tile_m, Cp), lambda i: (i, 0)),
        out_shape=jax.ShapeDtypeStruct((Mp, Cp), jnp.float32),
        compiler_params=pltpu.CompilerParams(
            dimension_semantics=("parallel",),
            vmem_limit_bytes=32 * 1024 * 1024),
    )(y, scale.reshape(1, Cp), shift.reshape(1, Cp))

    return out[:M, :cout].reshape(N, OH, OW, cout)


def fused_head(x_nhwc, hp, dim, *, eps=1e-5):
    """Bottleneck Conv2d(C,dim,4,1,0)+BN + flatten + Linear(dim,128)+Sigmoid."""
    N, H, W, C = x_nhwc.shape            # H == W == 4 for this architecture
    K = H * W * C
    Kp = _round_up(K, 128)
    Dp = _round_up(dim, 128)
    Np = _round_up(N, 8)

    x2 = jnp.pad(x_nhwc.reshape(N, K), ((0, Np - N), (0, Kp - K))).astype(jnp.bfloat16)
    w1 = jnp.transpose(hp["w1"], (2, 3, 1, 0)).reshape(K, dim)
    w1 = jnp.pad(w1, ((0, Kp - K), (0, Dp - dim))).astype(jnp.bfloat16)
    g1 = jnp.pad(hp["gamma1"], (0, Dp - dim)).reshape(1, Dp)
    b1 = jnp.pad(hp["beta1"], (0, Dp - dim)).reshape(1, Dp)
    w2 = jnp.pad(hp["w2"].T, ((0, Dp - dim), (0, 0)))          # (Dp, 128), f32
    b2 = hp["b2"].reshape(1, 128)

    out = pl.pallas_call(
        functools.partial(_head_kernel, n_real=N, eps=eps),
        out_shape=jax.ShapeDtypeStruct((Np, 128), jnp.float32),
        in_specs=[_VMEM] * 6,
        out_specs=_VMEM,
    )(x2, w1, g1, b1, w2, b2)
    return out[:N]


# --------------------------- model construction ------------------------------

def build_key_decoder_128(key, nc, size, dim):
    """Mirror conv() + fc from models.py; deterministic param init."""
    nf = 64
    n_layer = int(math.log2(size)) - 1
    chans = [(nc, nf)]
    for i in range(n_layer - 2):
        chans.append((min(2 ** i, 8) * nf, min(2 ** (i + 1), 8) * nf))
    c_last = min(2 ** (n_layer - 2), 8) * nf

    dcgan = []
    for cin, cout in chans:
        key, kw = jax.random.split(key)
        dcgan.append(dict(
            w=0.05 * jax.random.normal(kw, (cout, cin, 4, 4), jnp.float32),
            gamma=jnp.ones((cout,), jnp.float32),     # BN weight init
            beta=jnp.zeros((cout,), jnp.float32)))    # BN bias init
    key, k1, k2, k3 = jax.random.split(key, 4)
    head = dict(
        w1=0.05 * jax.random.normal(k1, (dim, c_last, 4, 4), jnp.float32),
        gamma1=jnp.ones((dim,), jnp.float32),
        beta1=jnp.zeros((dim,), jnp.float32),
        w2=0.05 * jax.random.normal(k2, (128, dim), jnp.float32),
        b2=0.05 * jax.random.normal(k3, (128,), jnp.float32))
    return dcgan, head


def key_decoder_forward(x_nchw, dcgan, head, dim):
    x = jnp.transpose(x_nchw, (0, 2, 3, 1))           # NCHW -> NHWC, once
    for prm in dcgan:
        x = conv_bn_lrelu(x, prm["w"], prm["gamma"], prm["beta"])
    return fused_head(x, head, dim)                   # (batch, 128)


# --------------------------- pure-JAX reference -------------------------------

def _ref_forward(x_nchw, dcgan, head, dim, eps=1e-5):
    x = jnp.transpose(x_nchw, (0, 2, 3, 1))
    for prm in dcgan:
        k = jnp.transpose(prm["w"], (2, 3, 1, 0))
        y = jax.lax.conv_general_dilated(
            x, k, (2, 2), [(1, 1), (1, 1)],
            dimension_numbers=("NHWC", "HWIO", "NHWC"))
        mean = jnp.mean(y, axis=(0, 1, 2))
        var = jnp.mean(jnp.square(y - mean), axis=(0, 1, 2))
        y = (y - mean) * jax.lax.rsqrt(var + eps) * prm["gamma"] + prm["beta"]
        x = jnp.where(y > 0, y, 0.2 * y)
    k = jnp.transpose(head["w1"], (2, 3, 1, 0))
    y = jax.lax.conv_general_dilated(
        x, k, (1, 1), [(0, 0), (0, 0)],
        dimension_numbers=("NHWC", "HWIO", "NHWC"))
    mean = jnp.mean(y, axis=(0, 1, 2))
    var = jnp.mean(jnp.square(y - mean), axis=(0, 1, 2))
    y = (y - mean) * jax.lax.rsqrt(var + eps) * head["gamma1"] + head["beta1"]
    z = y.reshape(x.shape[0], dim)
    return jax.nn.sigmoid(z @ head["w2"].T + head["b2"])


# ----------------------------------- main -------------------------------------

if __name__ == "__main__":
    nc, size, dim, batch = 4, 16, 32, 2
    key = jax.random.PRNGKey(0)
    kx, kp = jax.random.split(key)
    x = jax.random.normal(kx, (batch, nc, size, size), jnp.float32)

    dcgan, head = build_key_decoder_128(kp, nc, size, dim)
    fwd = jax.jit(lambda inp: key_decoder_forward(inp, dcgan, head, dim))

    y = fwd(x)
    jax.block_until_ready(y)
    assert y.shape == (batch, 128), y.shape
    assert bool(jnp.all(jnp.isfinite(y)))

    y_ref = jax.jit(lambda inp: _ref_forward(inp, dcgan, head, dim))(x)
    err = float(jnp.max(jnp.abs(y - y_ref)))
    assert err < 5e-2, f"max abs err vs reference: {err}"
    print("KERNEL_OK")
</pallas_src>

<mosaic_0001>
module attributes {stable_mosaic.version = 11 : i64} {
  func.func @_bn_act_kernel(%arg0: i32, %arg1: memref<128x128xf32, #tpu.memory_space<vmem>>, %arg2: memref<1x128xf32, #tpu.memory_space<vmem>>, %arg3: memref<1x128xf32, #tpu.memory_space<vmem>>, %arg4: memref<128x128xf32, #tpu.memory_space<vmem>>) attributes {dimension_semantics = [#tpu.dimension_semantics<parallel>], iteration_bounds = array<i64: 1>, scalar_prefetch = 0 : i64, scratch_operands = 0 : i64, tpu.core_type = #tpu.core_type<tc>, window_params = [{transform_indices = @transform_0, window_bounds = array<i64: 128, 128>}, {pipeline_mode = #tpu.pipeline_mode<synchronous>, transform_indices = @transform_1, window_bounds = array<i64: 1, 128>}, {pipeline_mode = #tpu.pipeline_mode<synchronous>, transform_indices = @transform_2, window_bounds = array<i64: 1, 128>}, {transform_indices = @transform_3, window_bounds = array<i64: 128, 128>}]} {
    %c0 = arith.constant 0 : index
    %c0_0 = arith.constant 0 : index
    %0 = vector.load %arg1[%c0, %c0_0] : memref<128x128xf32, #tpu.memory_space<vmem>>, vector<128x128xf32>
    %c0_1 = arith.constant 0 : index
    %c0_2 = arith.constant 0 : index
    %1 = vector.load %arg2[%c0_1, %c0_2] : memref<1x128xf32, #tpu.memory_space<vmem>>, vector<1x128xf32>
    %2 = vector.broadcast %1 : vector<1x128xf32> to vector<128x128xf32>
    %3 = arith.mulf %0, %2 : vector<128x128xf32>
    %c0_3 = arith.constant 0 : index
    %c0_4 = arith.constant 0 : index
    %4 = vector.load %arg3[%c0_3, %c0_4] : memref<1x128xf32, #tpu.memory_space<vmem>>, vector<1x128xf32>
    %5 = vector.broadcast %4 : vector<1x128xf32> to vector<128x128xf32>
    %6 = arith.addf %3, %5 : vector<128x128xf32>
    %cst = arith.constant 0.000000e+00 : f32
    %7 = vector.broadcast %cst : f32 to vector<128x128xf32>
    %8 = arith.cmpf ogt, %6, %7 : vector<128x128xf32>
    %cst_5 = arith.constant 2.000000e-01 : f32
    %9 = vector.broadcast %cst_5 : f32 to vector<128x128xf32>
    %10 = arith.mulf %9, %6 : vector<128x128xf32>
    %11 = arith.select %8, %6, %10 : vector<128x128xi1>, vector<128x128xf32>
    %c0_6 = arith.constant 0 : index
    %c0_7 = arith.constant 0 : index
    %12 = vector.load %arg4[%c0_6, %c0_7] : memref<128x128xf32, #tpu.memory_space<vmem>>, vector<128x128xf32>
    tpu.vector_store %arg4[%c0_6, %c0_7], %11 {strides = array<i32>} : memref<128x128xf32, #tpu.memory_space<vmem>>, vector<128x128xf32>,
    return
  }
  func.func @transform_0(%arg0: i32) -> (i32, i32) {
    %c0_i32 = arith.constant 0 : i32
    %c0_i32_0 = arith.constant 0 : i32
    return %arg0, %c0_i32 : i32, i32
  }
  func.func @transform_1(%arg0: i32) -> (i32, i32) {
    %c0_i32 = arith.constant 0 : i32
    %c0_i32_0 = arith.constant 0 : i32
    %c0_i32_1 = arith.constant 0 : i32
    return %c0_i32, %c0_i32_0 : i32, i32
  }
  func.func @transform_2(%arg0: i32) -> (i32, i32) {
    %c0_i32 = arith.constant 0 : i32
    %c0_i32_0 = arith.constant 0 : i32
    %c0_i32_1 = arith.constant 0 : i32
    return %c0_i32, %c0_i32_0 : i32, i32
  }
  func.func @transform_3(%arg0: i32) -> (i32, i32) {
    %c0_i32 = arith.constant 0 : i32
    %c0_i32_0 = arith.constant 0 : i32
    return %arg0, %c0_i32 : i32, i32
  }
}

module attributes {stable_mosaic.version = 11 : i64} {
  func.func @_mm_stats_kernel(%arg0: i32, %arg1: memref<128x128xbf16, #tpu.memory_space<vmem>>, %arg2: memref<128x128xbf16, #tpu.memory_space<vmem>>, %arg3: memref<128x128xf32, #tpu.memory_space<vmem>>, %arg4: memref<1x8x128xf32, #tpu.memory_space<vmem>>) attributes {dimension_semantics = [#tpu.dimension_semantics<parallel>], iteration_bounds = array<i64: 1>, scalar_prefetch = 0 : i64, scratch_operands = 0 : i64, tpu.core_type = #tpu.core_type<tc>, window_params = [{transform_indices = @transform_0, window_bounds = array<i64: 128, 128>}, {pipeline_mode = #tpu.pipeline_mode<synchronous>, transform_indices = @transform_1, window_bounds = array<i64: 128, 128>}, {transform_indices = @transform_2, window_bounds = array<i64: 128, 128>}, {transform_indices = @transform_3, window_bounds = array<i64: 1, 8, 128>}]} {
    %c0 = arith.constant 0 : index
    %c0_0 = arith.constant 0 : index
    %0 = vector.load %arg1[%c0, %c0_0] : memref<128x128xbf16, #tpu.memory_space<vmem>>, vector<128x128xbf16>
    %c0_1 = arith.constant 0 : index
    %c0_2 = arith.constant 0 : index
    %1 = vector.load %arg2[%c0_1, %c0_2] : memref<128x128xbf16, #tpu.memory_space<vmem>>, vector<128x128xbf16>
    %cst = arith.constant dense<0.000000e+00> : vector<128x128xf32>
    %2 = tpu.matmul %0, %1, %cst {dimension_numbers = #tpu.dot_dimension_numbers<[1], [0], [0], [1], [0, 0, 1, 1], [], []>} : vector<128x128xbf16>, vector<128x128xbf16>, vector<128x128xf32> -> vector<128x128xf32>
    %c0_3 = arith.constant 0 : index
    %c0_4 = arith.constant 0 : index
    %3 = vector.load %arg3[%c0_3, %c0_4] : memref<128x128xf32, #tpu.memory_space<vmem>>, vector<128x128xf32>
    tpu.vector_store %arg3[%c0_3, %c0_4], %2 {strides = array<i32>} : memref<128x128xf32, #tpu.memory_space<vmem>>, vector<128x128xf32>,
    %4 = tpu.iota {dimensions = array<i32: 0>} : vector<128x128xi32>
    %c128_i32 = arith.constant 128 : i32
    %5 = arith.muli %arg0, %c128_i32 : i32
    %6 = vector.broadcast %5 : i32 to vector<128x128xi32>
    %7 = arith.addi %4, %6 : vector<128x128xi32>
    %c128_i32_5 = arith.constant 128 : i32
    %8 = vector.broadcast %c128_i32_5 : i32 to vector<128x128xi32>
    %9 = arith.cmpi slt, %7, %8 : vector<128x128xi32>
    %10 = arith.extui %9 : vector<128x128xi1> to vector<128x128xi32>
    %11 = arith.sitofp %10 : vector<128x128xi32> to vector<128x128xf32>
    %12 = arith.mulf %2, %11 : vector<128x128xf32>
    %cst_6 = arith.constant dense<0.000000e+00> : vector<128xf32>
    %13 = vector.multi_reduction <add>, %12, %cst_6 [0] : vector<128x128xf32> to vector<128xf32>
    %14 = vector.shape_cast %13 : vector<128xf32> to vector<1x128xf32>
    %15 = arith.mulf %12, %2 : vector<128x128xf32>
    %cst_7 = arith.constant dense<0.000000e+00> : vector<128xf32>
    %16 = vector.multi_reduction <add>, %15, %cst_7 [0] : vector<128x128xf32> to vector<128xf32>
    %17 = vector.shape_cast %16 : vector<128xf32> to vector<1x128xf32>
    %cst_8 = arith.constant 0.000000e+00 : f32
    %18 = vector.broadcast %cst_8 : f32 to vector<6x128xf32>
    %19 = tpu.concatenate %14, %17, %18 in 0 : vector<1x128xf32>, vector<1x128xf32>, vector<6x128xf32> -> vector<8x128xf32>
    %20 = vector.shape_cast %19 : vector<8x128xf32> to vector<1x8x128xf32>
    %c0_9 = arith.constant 0 : index
    %c0_10 = arith.constant 0 : index
    %c0_11 = arith.constant 0 : index
    %21 = vector.load %arg4[%c0_9, %c0_10, %c0_11] : memref<1x8x128xf32, #tpu.memory_space<vmem>>, vector<1x8x128xf32>
    tpu.vector_store %arg4[%c0_9, %c0_10, %c0_11], %20 {strides = array<i32>} : memref<1x8x128xf32, #tpu.memory_space<vmem>>, vector<1x8x128xf32>,
    return
  }
  func.func @transform_0(%arg0: i32) -> (i32, i32) {
    %c0_i32 = arith.constant 0 : i32
    %c0_i32_0 = arith.constant 0 : i32
    return %arg0, %c0_i32 : i32, i32
  }
  func.func @transform_1(%arg0: i32) -> (i32, i32) {
    %c0_i32 = arith.constant 0 : i32
    %c0_i32_0 = arith.constant 0 : i32
    %c0_i32_1 = arith.constant 0 : i32
    return %c0_i32, %c0_i32_0 : i32, i32
  }
  func.func @transform_2(%arg0: i32) -> (i32, i32) {
    %c0_i32 = arith.constant 0 : i32
    %c0_i32_0 = arith.constant 0 : i32
    return %arg0, %c0_i32 : i32, i32
  }
  func.func @transform_3(%arg0: i32) -> (i32, i32, i32) {
    %c0_i32 = arith.constant 0 : i32
    %c0_i32_0 = arith.constant 0 : i32
    %c0_i32_1 = arith.constant 0 : i32
    return %arg0, %c0_i32, %c0_i32_0 : i32, i32, i32
  }
}

module attributes {stable_mosaic.version = 11 : i64} {
  func.func @_mm_stats_kernel(%arg0: i32, %arg1: memref<32x1024xbf16, #tpu.memory_space<vmem>>, %arg2: memref<1024x128xbf16, #tpu.memory_space<vmem>>, %arg3: memref<32x128xf32, #tpu.memory_space<vmem>>, %arg4: memref<1x8x128xf32, #tpu.memory_space<vmem>>) attributes {dimension_semantics = [#tpu.dimension_semantics<parallel>], iteration_bounds = array<i64: 1>, scalar_prefetch = 0 : i64, scratch_operands = 0 : i64, tpu.core_type = #tpu.core_type<tc>, window_params = [{transform_indices = @transform_0, window_bounds = array<i64: 32, 1024>}, {pipeline_mode = #tpu.pipeline_mode<synchronous>, transform_indices = @transform_1, window_bounds = array<i64: 1024, 128>}, {transform_indices = @transform_2, window_bounds = array<i64: 32, 128>}, {transform_indices = @transform_3, window_bounds = array<i64: 1, 8, 128>}]} {
    %c0 = arith.constant 0 : index
    %c0_0 = arith.constant 0 : index
    %0 = vector.load %arg1[%c0, %c0_0] : memref<32x1024xbf16, #tpu.memory_space<vmem>>, vector<32x1024xbf16>
    %c0_1 = arith.constant 0 : index
    %c0_2 = arith.constant 0 : index
    %1 = vector.load %arg2[%c0_1, %c0_2] : memref<1024x128xbf16, #tpu.memory_space<vmem>>, vector<1024x128xbf16>
    %cst = arith.constant dense<0.000000e+00> : vector<32x128xf32>
    %2 = tpu.matmul %0, %1, %cst {dimension_numbers = #tpu.dot_dimension_numbers<[1], [0], [0], [1], [0, 0, 1, 1], [], []>} : vector<32x1024xbf16>, vector<1024x128xbf16>, vector<32x128xf32> -> vector<32x128xf32>
    %c0_3 = arith.constant 0 : index
    %c0_4 = arith.constant 0 : index
    %3 = vector.load %arg3[%c0_3, %c0_4] : memref<32x128xf32, #tpu.memory_space<vmem>>, vector<32x128xf32>
    tpu.vector_store %arg3[%c0_3, %c0_4], %2 {strides = array<i32>} : memref<32x128xf32, #tpu.memory_space<vmem>>, vector<32x128xf32>,
    %4 = tpu.iota {dimensions = array<i32: 0>} : vector<32x128xi32>
    %c32_i32 = arith.constant 32 : i32
    %5 = arith.muli %arg0, %c32_i32 : i32
    %6 = vector.broadcast %5 : i32 to vector<32x128xi32>
    %7 = arith.addi %4, %6 : vector<32x128xi32>
    %c32_i32_5 = arith.constant 32 : i32
    %8 = vector.broadcast %c32_i32_5 : i32 to vector<32x128xi32>
    %9 = arith.cmpi slt, %7, %8 : vector<32x128xi32>
    %10 = arith.extui %9 : vector<32x128xi1> to vector<32x128xi32>
    %11 = arith.sitofp %10 : vector<32x128xi32> to vector<32x128xf32>
    %12 = arith.mulf %2, %11 : vector<32x128xf32>
    %cst_6 = arith.constant dense<0.000000e+00> : vector<128xf32>
    %13 = vector.multi_reduction <add>, %12, %cst_6 [0] : vector<32x128xf32> to vector<128xf32>
    %14 = vector.shape_cast %13 : vector<128xf32> to vector<1x128xf32>
    %15 = arith.mulf %12, %2 : vector<32x128xf32>
    %cst_7 = arith.constant dense<0.000000e+00> : vector<128xf32>
    %16 = vector.multi_reduction <add>, %15, %cst_7 [0] : vector<32x128xf32> to vector<128xf32>
    %17 = vector.shape_cast %16 : vector<128xf32> to vector<1x128xf32>
    %cst_8 = arith.constant 0.000000e+00 : f32
    %18 = vector.broadcast %cst_8 : f32 to vector<6x128xf32>
    %19 = tpu.concatenate %14, %17, %18 in 0 : vector<1x128xf32>, vector<1x128xf32>, vector<6x128xf32> -> vector<8x128xf32>
    %20 = vector.shape_cast %19 : vector<8x128xf32> to vector<1x8x128xf32>
    %c0_9 = arith.constant 0 : index
    %c0_10 = arith.constant 0 : index
    %c0_11 = arith.constant 0 : index
    %21 = vector.load %arg4[%c0_9, %c0_10, %c0_11] : memref<1x8x128xf32, #tpu.memory_space<vmem>>, vector<1x8x128xf32>
    tpu.vector_store %arg4[%c0_9, %c0_10, %c0_11], %20 {strides = array<i32>} : memref<1x8x128xf32, #tpu.memory_space<vmem>>, vector<1x8x128xf32>,
    return
  }
  func.func @transform_0(%arg0: i32) -> (i32, i32) {
    %c0_i32 = arith.constant 0 : i32
    %c0_i32_0 = arith.constant 0 : i32
    return %arg0, %c0_i32 : i32, i32
  }
  func.func @transform_1(%arg0: i32) -> (i32, i32) {
    %c0_i32 = arith.constant 0 : i32
    %c0_i32_0 = arith.constant 0 : i32
    %c0_i32_1 = arith.constant 0 : i32
    return %c0_i32, %c0_i32_0 : i32, i32
  }
  func.func @transform_2(%arg0: i32) -> (i32, i32) {
    %c0_i32 = arith.constant 0 : i32
    %c0_i32_0 = arith.constant 0 : i32
    return %arg0, %c0_i32 : i32, i32
  }
  func.func @transform_3(%arg0: i32) -> (i32, i32, i32) {
    %c0_i32 = arith.constant 0 : i32
    %c0_i32_0 = arith.constant 0 : i32
    %c0_i32_1 = arith.constant 0 : i32
    return %arg0, %c0_i32, %c0_i32_0 : i32, i32, i32
  }
}

module attributes {stable_mosaic.version = 11 : i64} {
  func.func @_bn_act_kernel(%arg0: i32, %arg1: memref<32x128xf32, #tpu.memory_space<vmem>>, %arg2: memref<1x128xf32, #tpu.memory_space<vmem>>, %arg3: memref<1x128xf32, #tpu.memory_space<vmem>>, %arg4: memref<32x128xf32, #tpu.memory_space<vmem>>) attributes {dimension_semantics = [#tpu.dimension_semantics<parallel>], iteration_bounds = array<i64: 1>, scalar_prefetch = 0 : i64, scratch_operands = 0 : i64, tpu.core_type = #tpu.core_type<tc>, window_params = [{transform_indices = @transform_0, window_bounds = array<i64: 32, 128>}, {pipeline_mode = #tpu.pipeline_mode<synchronous>, transform_indices = @transform_1, window_bounds = array<i64: 1, 128>}, {pipeline_mode = #tpu.pipeline_mode<synchronous>, transform_indices = @transform_2, window_bounds = array<i64: 1, 128>}, {transform_indices = @transform_3, window_bounds = array<i64: 32, 128>}]} {
    %c0 = arith.constant 0 : index
    %c0_0 = arith.constant 0 : index
    %0 = vector.load %arg1[%c0, %c0_0] : memref<32x128xf32, #tpu.memory_space<vmem>>, vector<32x128xf32>
    %c0_1 = arith.constant 0 : index
    %c0_2 = arith.constant 0 : index
    %1 = vector.load %arg2[%c0_1, %c0_2] : memref<1x128xf32, #tpu.memory_space<vmem>>, vector<1x128xf32>
    %2 = vector.broadcast %1 : vector<1x128xf32> to vector<32x128xf32>
    %3 = arith.mulf %0, %2 : vector<32x128xf32>
    %c0_3 = arith.constant 0 : index
    %c0_4 = arith.constant 0 : index
    %4 = vector.load %arg3[%c0_3, %c0_4] : memref<1x128xf32, #tpu.memory_space<vmem>>, vector<1x128xf32>
    %5 = vector.broadcast %4 : vector<1x128xf32> to vector<32x128xf32>
    %6 = arith.addf %3, %5 : vector<32x128xf32>
    %cst = arith.constant 0.000000e+00 : f32
    %7 = vector.broadcast %cst : f32 to vector<32x128xf32>
    %8 = arith.cmpf ogt, %6, %7 : vector<32x128xf32>
    %cst_5 = arith.constant 2.000000e-01 : f32
    %9 = vector.broadcast %cst_5 : f32 to vector<32x128xf32>
    %10 = arith.mulf %9, %6 : vector<32x128xf32>
    %11 = arith.select %8, %6, %10 : vector<32x128xi1>, vector<32x128xf32>
    %c0_6 = arith.constant 0 : index
    %c0_7 = arith.constant 0 : index
    %12 = vector.load %arg4[%c0_6, %c0_7] : memref<32x128xf32, #tpu.memory_space<vmem>>, vector<32x128xf32>
    tpu.vector_store %arg4[%c0_6, %c0_7], %11 {strides = array<i32>} : memref<32x128xf32, #tpu.memory_space<vmem>>, vector<32x128xf32>,
    return
  }
  func.func @transform_0(%arg0: i32) -> (i32, i32) {
    %c0_i32 = arith.constant 0 : i32
    %c0_i32_0 = arith.constant 0 : i32
    return %arg0, %c0_i32 : i32, i32
  }
  func.func @transform_1(%arg0: i32) -> (i32, i32) {
    %c0_i32 = arith.constant 0 : i32
    %c0_i32_0 = arith.constant 0 : i32
    %c0_i32_1 = arith.constant 0 : i32
    return %c0_i32, %c0_i32_0 : i32, i32
  }
  func.func @transform_2(%arg0: i32) -> (i32, i32) {
    %c0_i32 = arith.constant 0 : i32
    %c0_i32_0 = arith.constant 0 : i32
    %c0_i32_1 = arith.constant 0 : i32
    return %c0_i32, %c0_i32_0 : i32, i32
  }
  func.func @transform_3(%arg0: i32) -> (i32, i32) {
    %c0_i32 = arith.constant 0 : i32
    %c0_i32_0 = arith.constant 0 : i32
    return %arg0, %c0_i32 : i32, i32
  }
}

module attributes {stable_mosaic.version = 11 : i64} {
  func.func @_head_kernel(%arg0: memref<8x2048xbf16, #tpu.memory_space<vmem>>, %arg1: memref<2048x128xbf16, #tpu.memory_space<vmem>>, %arg2: memref<1x128xf32, #tpu.memory_space<vmem>>, %arg3: memref<1x128xf32, #tpu.memory_space<vmem>>, %arg4: memref<128x128xf32, #tpu.memory_space<vmem>>, %arg5: memref<1x128xf32, #tpu.memory_space<vmem>>, %arg6: memref<8x128xf32, #tpu.memory_space<vmem>>) attributes {dimension_semantics = [], scalar_prefetch = 0 : i64, scratch_operands = 0 : i64, tpu.core_type = #tpu.core_type<tc>} {
    %c0 = arith.constant 0 : index
    %c0_0 = arith.constant 0 : index
    %0 = vector.load %arg0[%c0, %c0_0] : memref<8x2048xbf16, #tpu.memory_space<vmem>>, vector<8x2048xbf16>
    %c0_1 = arith.constant 0 : index
    %c0_2 = arith.constant 0 : index
    %1 = vector.load %arg1[%c0_1, %c0_2] : memref<2048x128xbf16, #tpu.memory_space<vmem>>, vector<2048x128xbf16>
    %cst = arith.constant dense<0.000000e+00> : vector<8x128xf32>
    %2 = tpu.matmul %0, %1, %cst {dimension_numbers = #tpu.dot_dimension_numbers<[1], [0], [0], [1], [0, 0, 1, 1], [], []>} : vector<8x2048xbf16>, vector<2048x128xbf16>, vector<8x128xf32> -> vector<8x128xf32>
    %3 = tpu.iota {dimensions = array<i32: 0>} : vector<8x128xi32>
    %c2_i32 = arith.constant 2 : i32
    %4 = vector.broadcast %c2_i32 : i32 to vector<8x128xi32>
    %5 = arith.cmpi slt, %3, %4 : vector<8x128xi32>
    %6 = arith.extui %5 : vector<8x128xi1> to vector<8x128xi32>
    %7 = arith.sitofp %6 : vector<8x128xi32> to vector<8x128xf32>
    %8 = arith.mulf %2, %7 : vector<8x128xf32>
    %cst_3 = arith.constant dense<0.000000e+00> : vector<128xf32>
    %9 = vector.multi_reduction <add>, %8, %cst_3 [0] : vector<8x128xf32> to vector<128xf32>
    %10 = vector.shape_cast %9 : vector<128xf32> to vector<1x128xf32>
    %cst_4 = arith.constant 5.000000e-01 : f32
    %11 = vector.broadcast %cst_4 : f32 to vector<1x128xf32>
    %12 = arith.mulf %10, %11 : vector<1x128xf32>
    %13 = arith.mulf %2, %2 : vector<8x128xf32>
    %14 = arith.mulf %13, %7 : vector<8x128xf32>
    %cst_5 = arith.constant dense<0.000000e+00> : vector<128xf32>
    %15 = vector.multi_reduction <add>, %14, %cst_5 [0] : vector<8x128xf32> to vector<128xf32>
    %16 = vector.shape_cast %15 : vector<128xf32> to vector<1x128xf32>
    %cst_6 = arith.constant 5.000000e-01 : f32
    %17 = vector.broadcast %cst_6 : f32 to vector<1x128xf32>
    %18 = arith.mulf %16, %17 : vector<1x128xf32>
    %19 = arith.mulf %12, %12 : vector<1x128xf32>
    %20 = arith.subf %18, %19 : vector<1x128xf32>
    %cst_7 = arith.constant 0.000000e+00 : f32
    %21 = vector.broadcast %cst_7 : f32 to vector<1x128xf32>
    %22 = arith.maximumf %20, %21 : vector<1x128xf32>
    %23 = vector.broadcast %12 : vector<1x128xf32> to vector<8x128xf32>
    %24 = arith.subf %2, %23 : vector<8x128xf32>
    %cst_8 = arith.constant 9.99999974E-6 : f32
    %25 = vector.broadcast %cst_8 : f32 to vector<1x128xf32>
    %26 = arith.addf %22, %25 : vector<1x128xf32>
    %27 = math.rsqrt %26 : vector<1x128xf32>
    %28 = vector.broadcast %27 : vector<1x128xf32> to vector<8x128xf32>
    %29 = arith.mulf %24, %28 : vector<8x128xf32>
    %c0_9 = arith.constant 0 : index
    %c0_10 = arith.constant 0 : index
    %30 = vector.load %arg2[%c0_9, %c0_10] : memref<1x128xf32, #tpu.memory_space<vmem>>, vector<1x128xf32>
    %31 = vector.broadcast %30 : vector<1x128xf32> to vector<8x128xf32>
    %32 = arith.mulf %29, %31 : vector<8x128xf32>
    %c0_11 = arith.constant 0 : index
    %c0_12 = arith.constant 0 : index
    %33 = vector.load %arg3[%c0_11, %c0_12] : memref<1x128xf32, #tpu.memory_space<vmem>>, vector<1x128xf32>
    %34 = vector.broadcast %33 : vector<1x128xf32> to vector<8x128xf32>
    %35 = arith.addf %32, %34 : vector<8x128xf32>
    %c0_13 = arith.constant 0 : index
    %c0_14 = arith.constant 0 : index
    %36 = vector.load %arg4[%c0_13, %c0_14] : memref<128x128xf32, #tpu.memory_space<vmem>>, vector<128x128xf32>
    %cst_15 = arith.constant dense<0.000000e+00> : vector<8x128xf32>
    %37 = tpu.matmul %35, %36, %cst_15 {dimension_numbers = #tpu.dot_dimension_numbers<[1], [0], [0], [1], [0, 0, 1, 1], [], []>} : vector<8x128xf32>, vector<128x128xf32>, vector<8x128xf32> -> vector<8x128xf32>
    %c0_16 = arith.constant 0 : index
    %c0_17 = arith.constant 0 : index
    %38 = vector.load %arg5[%c0_16, %c0_17] : memref<1x128xf32, #tpu.memory_space<vmem>>, vector<1x128xf32>
    %39 = vector.broadcast %38 : vector<1x128xf32> to vector<8x128xf32>
    %40 = arith.addf %37, %39 : vector<8x128xf32>
    %41 = arith.negf %40 : vector<8x128xf32>
    %42 = math.exp %41 : vector<8x128xf32>
    %cst_18 = arith.constant 1.000000e+00 : f32
    %43 = vector.broadcast %cst_18 : f32 to vector<8x128xf32>
    %44 = arith.addf %43, %42 : vector<8x128xf32>
    %45 = arith.divf %43, %44 : vector<8x128xf32>
    %c0_19 = arith.constant 0 : index
    %c0_20 = arith.constant 0 : index
    %46 = vector.load %arg6[%c0_19, %c0_20] : memref<8x128xf32, #tpu.memory_space<vmem>>, vector<8x128xf32>
    tpu.vector_store %arg6[%c0_19, %c0_20], %45 {strides = array<i32>} : memref<8x128xf32, #tpu.memory_space<vmem>>, vector<8x128xf32>,
    return
  }
}

</mosaic_0001>

<llo_original>
// kernel: _lambda_.6
$region0: #{_lambda_.6}
  #allocation0 [shape = 'u32[]', space=smem, size = 0x4, offset = 0x4, fixed_abs, tag = 'smem constant byte address 0x4 - core index']
  #allocation1 [shape = 'u32[144,128]{1,0:T(1,128)}', space=vmem, size = 0x12000, scoped, tag = 'internal scratch']
  %s0 = inlined_call_operand.vmem [shape: f32[128,128], index: 0, kind: input, shape index: {}]
  %s1 = inlined_call_operand.vmem [shape: f32[1,128], index: 1, kind: input, shape index: {}]
  %s2 = inlined_call_operand.vmem [shape: f32[1,128], index: 2, kind: input, shape index: {}]
  %s3 = inlined_call_operand.vmem [shape: f32[128,128], index: 3, kind: output, shape index: {}]
  %s4 = sld [smem:[#allocation0]]
  $region22: #{_lambda_.6} parent=0
    _
  %s6 = ssub.s32 1, %s4
  %s7 = scalar_select 0, %s6, %s4
  // Predicated region
  $region2: #{_lambda_.6} parent=0 // pred_check
    _
  $region3: #{_lambda_.6} parent=0 // pred_check_branch
    %9 = sbr.rel (0) target = $region5
  $region4: #{_lambda_.6} parent=0 // pred_region
    _
  $region5: #{_lambda_.6} parent=0 // pred_fallthru
    _
  // Predicated region
  $region6: #{_lambda_.6} parent=0 // pred_check
    _
  $region7: #{_lambda_.6} parent=0 // pred_check_branch
    %11 = sbr.rel (0) target = $region9
  $region8: #{_lambda_.6} parent=0 // pred_region
    _
  $region9: #{_lambda_.6} parent=0 // pred_fallthru
    _
  // Predicated region
  $region10: #{_lambda_.6} parent=0 // pred_check
    _
  $region11: #{_lambda_.6} parent=0 // pred_check_branch
    %13 = sbr.rel (0) target = $region13
  $region12: #{_lambda_.6} parent=0 // pred_region
    _
  $region13: #{_lambda_.6} parent=0 // pred_fallthru
    _
  %v14 = vld [vmem:[%s0] sm:$0xff]
  %v15 = vld [vmem:[%s0 + $0x8] sm:$0xff]
  %v16 = vld [vmem:[%s0 + $0x10] sm:$0xff]
  %v17 = vld [vmem:[%s0 + $0x18] sm:$0xff]
  %v18 = vld [vmem:[%s0 + $0x20] sm:$0xff]
  %v19 = vld [vmem:[%s0 + $0x28] sm:$0xff]
  %v20 = vld [vmem:[%s0 + $0x30] sm:$0xff]
  %v21 = vld [vmem:[%s0 + $0x38] sm:$0xff]
  %v22 = vld [vmem:[%s0 + $0x40] sm:$0xff]
  %v23 = vld [vmem:[%s0 + $0x48] sm:$0xff]
  %v24 = vld [vmem:[%s0 + $0x50] sm:$0xff]
  %v25 = vld [vmem:[%s0 + $0x58] sm:$0xff]
  %v26 = vld [vmem:[%s0 + $0x60] sm:$0xff]
  %v27 = vld [vmem:[%s0 + $0x68] sm:$0xff]
  %v28 = vld [vmem:[%s0 + $0x70] sm:$0xff]
  %v29 = vld [vmem:[%s0 + $0x78] sm:$0xff]
  %v30 = vld [vmem:[%s1] sm:$0x1]
  %v32 = vlaneseq
  %v33 = vshrl.u32 %v32, 7
  %v34 = vsub.s32 0, %v33
  %v35 = vrot.slane %v30, %v34
  %v37 = vmul.f32 %v14, %v35
  %v38 = vmul.f32 %v15, %v35
  %v39 = vmul.f32 %v16, %v35
  %v40 = vmul.f32 %v17, %v35
  %v41 = vmul.f32 %v18, %v35
  %v42 = vmul.f32 %v19, %v35
  %v43 = vmul.f32 %v20, %v35
  %v44 = vmul.f32 %v21, %v35
  %v45 = vmul.f32 %v22, %v35
  %v46 = vmul.f32 %v23, %v35
  %v47 = vmul.f32 %v24, %v35
  %v48 = vmul.f32 %v25, %v35
  %v49 = vmul.f32 %v26, %v35
  %v50 = vmul.f32 %v27, %v35
  %v51 = vmul.f32 %v28, %v35
  %v52 = vmul.f32 %v29, %v35
  %v53 = vld [vmem:[%s2] sm:$0x1]
  %v55 = vlaneseq
  %v56 = vshrl.u32 %v55, 7
  %v57 = vsub.s32 0, %v56
  %v58 = vrot.slane %v53, %v57
  %v60 = vadd.f32 %v37, %v58
  %v61 = vadd.f32 %v38, %v58
  %v62 = vadd.f32 %v39, %v58
  %v63 = vadd.f32 %v40, %v58
  %v64 = vadd.f32 %v41, %v58
  %v65 = vadd.f32 %v42, %v58
  %v66 = vadd.f32 %v43, %v58
  %v67 = vadd.f32 %v44, %v58
  %v68 = vadd.f32 %v45, %v58
  %v69 = vadd.f32 %v46, %v58
  %v70 = vadd.f32 %v47, %v58
  %v71 = vadd.f32 %v48, %v58
  %v72 = vadd.f32 %v49, %v58
  %v73 = vadd.f32 %v50, %v58
  %v74 = vadd.f32 %v51, %v58
  %v75 = vadd.f32 %v52, %v58
  %vm76 = vcmp.gt.f32.partialorder %v60, 0.0
  %vm77 = vcmp.gt.f32.partialorder %v61, 0.0
  %vm78 = vcmp.gt.f32.partialorder %v62, 0.0
  %vm79 = vcmp.gt.f32.partialorder %v63, 0.0
  %vm80 = vcmp.gt.f32.partialorder %v64, 0.0
  %vm81 = vcmp.gt.f32.partialorder %v65, 0.0
  %vm82 = vcmp.gt.f32.partialorder %v66, 0.0
  %vm83 = vcmp.gt.f32.partialorder %v67, 0.0
  %vm84 = vcmp.gt.f32.partialorder %v68, 0.0
  %vm85 = vcmp.gt.f32.partialorder %v69, 0.0
  %vm86 = vcmp.gt.f32.partialorder %v70, 0.0
  %vm87 = vcmp.gt.f32.partialorder %v71, 0.0
  %vm88 = vcmp.gt.f32.partialorder %v72, 0.0
  %vm89 = vcmp.gt.f32.partialorder %v73, 0.0
  %vm90 = vcmp.gt.f32.partialorder %v74, 0.0
  %vm91 = vcmp.gt.f32.partialorder %v75, 0.0
  %v92 = vmul.f32 %v60, 0.2
  %v93 = vmul.f32 %v61, 0.2
  %v94 = vmul.f32 %v62, 0.2
  %v95 = vmul.f32 %v63, 0.2
  %v96 = vmul.f32 %v64, 0.2
  %v97 = vmul.f32 %v65, 0.2
  %v98 = vmul.f32 %v66, 0.2
  %v99 = vmul.f32 %v67, 0.2
  %v100 = vmul.f32 %v68, 0.2
  %v101 = vmul.f32 %v69, 0.2
  %v102 = vmul.f32 %v70, 0.2
  %v103 = vmul.f32 %v71, 0.2
  %v104 = vmul.f32 %v72, 0.2
  %v105 = vmul.f32 %v73, 0.2
  %v106 = vmul.f32 %v74, 0.2
  %v107 = vmul.f32 %v75, 0.2
  %v108 = vsel %vm76, %v60, %v92
  %v109 = vsel %vm77, %v61, %v93
  %v110 = vsel %vm78, %v62, %v94
  %v111 = vsel %vm79, %v63, %v95
  %v112 = vsel %vm80, %v64, %v96
  %v113 = vsel %vm81, %v65, %v97
  %v114 = vsel %vm82, %v66, %v98
  %v115 = vsel %vm83, %v67, %v99
  %v116 = vsel %vm84, %v68, %v100
  %v117 = vsel %vm85, %v69, %v101
  %v118 = vsel %vm86, %v70, %v102
  %v119 = vsel %vm87, %v71, %v103
  %v120 = vsel %vm88, %v72, %v104
  %v121 = vsel %vm89, %v73, %v105
  %v122 = vsel %vm90, %v74, %v106
  %v123 = vsel %vm91, %v75, %v107
  %124 = vst [vmem:[%s3] sm:$0xff] %v108
  %125 = vst [vmem:[%s3 + $0x8] sm:$0xff] %v109
  %126 = vst [vmem:[%s3 + $0x10] sm:$0xff] %v110
  %127 = vst [vmem:[%s3 + $0x18] sm:$0xff] %v111
  %128 = vst [vmem:[%s3 + $0x20] sm:$0xff] %v112
  %129 = vst [vmem:[%s3 + $0x28] sm:$0xff] %v113
  %130 = vst [vmem:[%s3 + $0x30] sm:$0xff] %v114
  %131 = vst [vmem:[%s3 + $0x38] sm:$0xff] %v115
  %132 = vst [vmem:[%s3 + $0x40] sm:$0xff] %v116
  %133 = vst [vmem:[%s3 + $0x48] sm:$0xff] %v117
  %134 = vst [vmem:[%s3 + $0x50] sm:$0xff] %v118
  %135 = vst [vmem:[%s3 + $0x58] sm:$0xff] %v119
  %136 = vst [vmem:[%s3 + $0x60] sm:$0xff] %v120
  %137 = vst [vmem:[%s3 + $0x68] sm:$0xff] %v121
  %138 = vst [vmem:[%s3 + $0x70] sm:$0xff] %v122
  %139 = vst [vmem:[%s3 + $0x78] sm:$0xff] %v123
  // Predicated region
  $region14: #{_lambda_.6} parent=0 // pred_check
    _
  $region15: #{_lambda_.6} parent=0 // pred_check_branch
    %141 = sbr.rel (0) target = $region17
  $region16: #{_lambda_.6} parent=0 // pred_region
    _
  $region17: #{_lambda_.6} parent=0 // pred_fallthru
    _
  // Predicated region
  $region18: #{_lambda_.6} parent=0 // pred_check
    _
  $region19: #{_lambda_.6} parent=0 // pred_check_branch
    %143 = sbr.rel (0) target = $region21
  $region20: #{_lambda_.6} parent=0 // pred_region
    _
  $region21: #{_lambda_.6} parent=0 // pred_fallthru
    _

// kernel: _lambda_.5
$region0: #{_lambda_.5}
  #allocation0 [shape = 'u32[]', space=smem, size = 0x4, offset = 0x4, fixed_abs, tag = 'smem constant byte address 0x4 - core index']
  #allocation1 [shape = 'u32[144,128]{1,0:T(1,128)}', space=vmem, size = 0x12000, scoped, tag = 'internal scratch']
  %s0 = inlined_call_operand.vmem [shape: bf16[128,128], index: 0, kind: input, shape index: {}]
  %s1 = inlined_call_operand.vmem [shape: bf16[128,128], index: 1, kind: input, shape index: {}]
  %s2 = inlined_call_operand.vmem [shape: f32[128,128], index: 2, kind: output, shape index: {0}]
  %s3 = inlined_call_operand.vmem [shape: f32[1,8,128], index: 3, kind: output, shape index: {1}]
  %4 = xla_tuple %s2, %s3
  %s5 = sld [smem:[#allocation0]]
  $region26: #{_lambda_.5} parent=0
    _
  %s7 = ssub.s32 1, %s5
  %s8 = scalar_select 0, %s7, %s5
  // Predicated region
  $region2: #{_lambda_.5} parent=0 // pred_check
    _
  $region3: #{_lambda_.5} parent=0 // pred_check_branch
    %10 = sbr.rel (0) target = $region5
  $region4: #{_lambda_.5} parent=0 // pred_region
    _
  $region5: #{_lambda_.5} parent=0 // pred_fallthru
    _
  // Predicated region
  $region6: #{_lambda_.5} parent=0 // pred_check
    _
  $region7: #{_lambda_.5} parent=0 // pred_check_branch
    %12 = sbr.rel (0) target = $region9
  $region8: #{_lambda_.5} parent=0 // pred_region
    _
  $region9: #{_lambda_.5} parent=0 // pred_fallthru
    _
  %v14 = vld [vmem:[%s0] sm:$0xf]
  %v15 = vld [vmem:[%s0 + $0x4] sm:$0xf]
  %v16 = vld [vmem:[%s0 + $0x8] sm:$0xf]
  %v17 = vld [vmem:[%s0 + $0xc] sm:$0xf]
  %v18 = vld [vmem:[%s0 + $0x10] sm:$0xf]
  %v19 = vld [vmem:[%s0 + $0x14] sm:$0xf]
  %v20 = vld [vmem:[%s0 + $0x18] sm:$0xf]
  %v21 = vld [vmem:[%s0 + $0x1c] sm:$0xf]
  %v22 = vld [vmem:[%s0 + $0x20] sm:$0xf]
  %v23 = vld [vmem:[%s0 + $0x24] sm:$0xf]
  %v24 = vld [vmem:[%s0 + $0x28] sm:$0xf]
  %v25 = vld [vmem:[%s0 + $0x2c] sm:$0xf]
  %v26 = vld [vmem:[%s0 + $0x30] sm:$0xf]
  %v27 = vld [vmem:[%s0 + $0x34] sm:$0xf]
  %v28 = vld [vmem:[%s0 + $0x38] sm:$0xf]
  %v29 = vld [vmem:[%s0 + $0x3c] sm:$0xf]
  %v30 = vld [vmem:[%s1] sm:$0xf]
  %v31 = vld [vmem:[%s1 + $0x4] sm:$0xf]
  %v32 = vld [vmem:[%s1 + $0x8] sm:$0xf]
  %v33 = vld [vmem:[%s1 + $0xc] sm:$0xf]
  %v34 = vld [vmem:[%s1 + $0x10] sm:$0xf]
  %v35 = vld [vmem:[%s1 + $0x14] sm:$0xf]
  %v36 = vld [vmem:[%s1 + $0x18] sm:$0xf]
  %v37 = vld [vmem:[%s1 + $0x1c] sm:$0xf]
  %v38 = vld [vmem:[%s1 + $0x20] sm:$0xf]
  %v39 = vld [vmem:[%s1 + $0x24] sm:$0xf]
  %v40 = vld [vmem:[%s1 + $0x28] sm:$0xf]
  %v41 = vld [vmem:[%s1 + $0x2c] sm:$0xf]
  %v42 = vld [vmem:[%s1 + $0x30] sm:$0xf]
  %v43 = vld [vmem:[%s1 + $0x34] sm:$0xf]
  %v44 = vld [vmem:[%s1 + $0x38] sm:$0xf]
  %v45 = vld [vmem:[%s1 + $0x3c] sm:$0xf]
  %v62 = vunpack.c.l.b16 %v14
  %v63 = vunpack.c.l.b16 %v15
  %v64 = vunpack.c.l.b16 %v16
  %v65 = vunpack.c.l.b16 %v17
  %v66 = vunpack.c.l.b16 %v18
  %v67 = vunpack.c.l.b16 %v19
  %v68 = vunpack.c.l.b16 %v20
  %v69 = vunpack.c.l.b16 %v21
  %v70 = vunpack.c.l.b16 %v22
  %v71 = vunpack.c.l.b16 %v23
  %v72 = vunpack.c.l.b16 %v24
  %v73 = vunpack.c.l.b16 %v25
  %v74 = vunpack.c.l.b16 %v26
  %v75 = vunpack.c.l.b16 %v27
  %v76 = vunpack.c.l.b16 %v28
  %v77 = vunpack.c.l.b16 %v29
  %v78 = vpack.c.b16 %v63, %v62
  %v79 = vpack.c.b16 %v65, %v64
  %v80 = vpack.c.b16 %v67, %v66
  %v81 = vpack.c.b16 %v69, %v68
  %v82 = vpack.c.b16 %v71, %v70
  %v83 = vpack.c.b16 %v73, %v72
  %v84 = vpack.c.b16 %v75, %v74
  %v85 = vpack.c.b16 %v77, %v76
  %v110 = vunpack.c.l.b16 %v30
  %v111 = vunpack.c.l.b16 %v31
  %v112 = vunpack.c.l.b16 %v32
  %v113 = vunpack.c.l.b16 %v33
  %v114 = vunpack.c.l.b16 %v34
  %v115 = vunpack.c.l.b16 %v35
  %v116 = vunpack.c.l.b16 %v36
  %v117 = vunpack.c.l.b16 %v37
  %v118 = vunpack.c.l.b16 %v38
  %v119 = vunpack.c.l.b16 %v39
  %v120 = vunpack.c.l.b16 %v40
  %v121 = vunpack.c.l.b16 %v41
  %v122 = vunpack.c.l.b16 %v42
  %v123 = vunpack.c.l.b16 %v43
  %v124 = vunpack.c.l.b16 %v44
  %v125 = vunpack.c.l.b16 %v45
  %v126 = vpack.c.b16 %v111, %v110
  %v127 = vpack.c.b16 %v113, %v112
  %v128 = vpack.c.b16 %v115, %v114
  %v129 = vpack.c.b16 %v117, %v116
  %v130 = vpack.c.b16 %v119, %v118
  %v131 = vpack.c.b16 %v121, %v120
  %v132 = vpack.c.b16 %v123, %v122
  %v133 = vpack.c.b16 %v125, %v124
  %142 = vmatprep.subr.bf16.mxu0 0
  %143 = vmatpush1.bf16.msra.mxu0 %v126
  %144 = vmatprep.subr.bf16.mxu0 0
  %145 = vmatpush1.bf16.msra.mxu0 %v127
  %146 = vmatprep.subr.bf16.mxu0 0
  %147 = vmatpush1.bf16.msra.mxu0 %v128
  %148 = vmatprep.subr.bf16.mxu0 0
  %149 = vmatpush1.bf16.msra.mxu0 %v129
  %150 = vmatprep.subr.bf16.mxu0 0
  %151 = vmatpush1.bf16.msra.mxu0 %v130
  %152 = vmatprep.subr.bf16.mxu0 0
  %153 = vmatpush1.bf16.msra.mxu0 %v131
  %154 = vmatprep.subr.bf16.mxu0 0
  %155 = vmatpush1.bf16.msra.mxu0 %v132
  %156 = vmatprep.subr.bf16.mxu0 0
  %157 = vmatpush1.bf16.msra.mxu0 %v133
  %158 = vmatprep.subr.bf16.mxu0 0
  %159 = vmatpush1.bf16.msra.mxu0 0
  %160 = vmatprep.subr.bf16.mxu0 0
  %161 = vmatpush1.bf16.msra.mxu0 0
  %162 = vmatprep.subr.bf16.mxu0 0
  %163 = vmatpush1.bf16.msra.mxu0 0
  %164 = vmatprep.subr.bf16.mxu0 0
  %165 = vmatpush1.bf16.msra.mxu0 0
  %166 = vmatprep.subr.bf16.mxu0 0
  %167 = vmatpush1.bf16.msra.mxu0 0
  %168 = vmatprep.subr.bf16.mxu0 0
  %169 = vmatpush1.bf16.msra.mxu0 0
  %170 = vmatprep.subr.bf16.mxu0 0
  %171 = vmatpush1.bf16.msra.mxu0 0
  %172 = vmatprep.subr.bf16.mxu0 0
  %173 = vmatpush1.bf16.msra.mxu0 0
  %174 = vmatprep.mubr.bf16.mxu0 0
  %175 = vmatmul.mubr.bf16.gmra.mrb[0].mxu0 %v78
  %v176 = vpop.f32.mrb[0].mxu0
  %v177 = vadd.f32 0.0, %v176
  %v178 = vpop.f32.mrb[0].mxu0
  %v179 = vpop.f32.mrb[0].mxu0
  %v180 = vadd.f32 0.0, %v179
  %v181 = vpop.f32.mrb[0].mxu0
  %182 = vmatprep.mubr.bf16.mxu0 0
  %183 = vmatmul.mubr.bf16.gmra.mrb[0].mxu0 %v79
  %v184 = vpop.f32.mrb[0].mxu0
  %v185 = vadd.f32 0.0, %v184
  %v186 = vpop.f32.mrb[0].mxu0
  %v187 = vpop.f32.mrb[0].mxu0
  %v188 = vadd.f32 0.0, %v187
  %v189 = vpop.f32.mrb[0].mxu0
  %190 = vmatprep.mubr.bf16.mxu0 0
  %191 = vmatmul.mubr.bf16.gmra.mrb[0].mxu0 %v80
  %v192 = vpop.f32.mrb[0].mxu0
  %v193 = vadd.f32 0.0, %v192
  %v194 = vpop.f32.mrb[0].mxu0
  %v195 = vpop.f32.mrb[0].mxu0
  %v196 = vadd.f32 0.0, %v195
  %v197 = vpop.f32.mrb[0].mxu0
  %198 = vmatprep.mubr.bf16.mxu0 0
  %199 = vmatmul.mubr.bf16.gmra.mrb[0].mxu0 %v81
  %v200 = vpop.f32.mrb[0].mxu0
  %v201 = vadd.f32 0.0, %v200
  %v202 = vpop.f32.mrb[0].mxu0
  %v203 = vpop.f32.mrb[0].mxu0
  %v204 = vadd.f32 0.0, %v203
  %v205 = vpop.f32.mrb[0].mxu0
  %206 = vmatprep.mubr.bf16.mxu0 0
  %207 = vmatmul.mubr.bf16.gmra.mrb[0].mxu0 %v82
  %v208 = vpop.f32.mrb[0].mxu0
  %v209 = vadd.f32 0.0, %v208
  %v210 = vpop.f32.mrb[0].mxu0
  %v211 = vpop.f32.mrb[0].mxu0
  %v212 = vadd.f32 0.0, %v211
  %v213 = vpop.f32.mrb[0].mxu0
  %214 = vmatprep.mubr.bf16.mxu0 0
  %215 = vmatmul.mubr.bf16.gmra.mrb[0].mxu0 %v83
  %v216 = vpop.f32.mrb[0].mxu0
  %v217 = vadd.f32 0.0, %v216
  %v218 = vpop.f32.mrb[0].mxu0
  %v219 = vpop.f32.mrb[0].mxu0
  %v220 = vadd.f32 0.0, %v219
  %v221 = vpop.f32.mrb[0].mxu0
  %222 = vmatprep.mubr.bf16.mxu0 0
  %223 = vmatmul.mubr.bf16.gmra.mrb[0].mxu0 %v84
  %v224 = vpop.f32.mrb[0].mxu0
  %v225 = vadd.f32 0.0, %v224
  %v226 = vpop.f32.mrb[0].mxu0
  %v227 = vpop.f32.mrb[0].mxu0
  %v228 = vadd.f32 0.0, %v227
  %v229 = vpop.f32.mrb[0].mxu0
  %230 = vmatprep.mubr.bf16.mxu0 0
  %231 = vmatmul.mubr.bf16.gmra.mrb[0].mxu0 %v85
  %v232 = vpop.f32.mrb[0].mxu0
  %v233 = vadd.f32 0.0, %v232
  %v234 = vpop.f32.mrb[0].mxu0
  %v235 = vpop.f32.mrb[0].mxu0
  %v236 = vadd.f32 0.0, %v235
  %v237 = vpop.f32.mrb[0].mxu0
  %238 = vdwg.mxu0
  %239 = vst [vmem:[%s2] sm:$0xff] %v177
  %240 = vst [vmem:[%s2 + $0x8] sm:$0xff] %v180
  %241 = vst [vmem:[%s2 + $0x10] sm:$0xff] %v185
  %242 = vst [vmem:[%s2 + $0x18] sm:$0xff] %v188
  %243 = vst [vmem:[%s2 + $0x20] sm:$0xff] %v193
  %244 = vst [vmem:[%s2 + $0x28] sm:$0xff] %v196
  %245 = vst [vmem:[%s2 + $0x30] sm:$0xff] %v201
  %246 = vst [vmem:[%s2 + $0x38] sm:$0xff] %v204
  %247 = vst [vmem:[%s2 + $0x40] sm:$0xff] %v209
  %248 = vst [vmem:[%s2 + $0x48] sm:$0xff] %v212
  %249 = vst [vmem:[%s2 + $0x50] sm:$0xff] %v217
  %250 = vst [vmem:[%s2 + $0x58] sm:$0xff] %v220
  %251 = vst [vmem:[%s2 + $0x60] sm:$0xff] %v225
  %252 = vst [vmem:[%s2 + $0x68] sm:$0xff] %v228
  %253 = vst [vmem:[%s2 + $0x70] sm:$0xff] %v233
  %254 = vst [vmem:[%s2 + $0x78] sm:$0xff] %v236
  %v255 = vlaneseq
  %v256 = vshrl.u32 %v255, 7
  %v257 = vadd.s32 %v256, 8
  %v258 = vadd.s32 %v256, 16
  %v259 = vadd.s32 %v256, 24
  %v260 = vadd.s32 %v256, 32
  %v261 = vadd.s32 %v256, 40
  %v262 = vadd.s32 %v256, 48
  %v263 = vadd.s32 %v256, 56
  %v264 = vadd.s32 %v256, 64
  %v265 = vadd.s32 %v256, 72
  %v266 = vadd.s32 %v256, 80
  %v267 = vadd.s32 %v256, 88
  %v268 = vadd.s32 %v256, 96
  %v269 = vadd.s32 %v256, 104
  %v270 = vadd.s32 %v256, 112
  %v271 = vadd.s32 %v256, 120
  %s272 = smul.u32 0, 128
  %v273 = vstv %s272
  %v274 = vadd.s32 %v256, %v273
  %v275 = vadd.s32 %v257, %v273
  %v276 = vadd.s32 %v258, %v273
  %v277 = vadd.s32 %v259, %v273
  %v278 = vadd.s32 %v260, %v273
  %v279 = vadd.s32 %v261, %v273
  %v280 = vadd.s32 %v262, %v273
  %v281 = vadd.s32 %v263, %v273
  %v282 = vadd.s32 %v264, %v273
  %v283 = vadd.s32 %v265, %v273
  %v284 = vadd.s32 %v266, %v273
  %v285 = vadd.s32 %v267, %v273
  %v286 = vadd.s32 %v268, %v273
  %v287 = vadd.s32 %v269, %v273
  %v288 = vadd.s32 %v270, %v273
  %v289 = vadd.s32 %v271, %v273
  %vm290 = vcmp.lt.s32.totalorder %v274, 128
  %vm291 = vcmp.lt.s32.totalorder %v275, 128
  %vm292 = vcmp.lt.s32.totalorder %v276, 128
  %vm293 = vcmp.lt.s32.totalorder %v277, 128
  %vm294 = vcmp.lt.s32.totalorder %v278, 128
  %vm295 = vcmp.lt.s32.totalorder %v279, 128
  %vm296 = vcmp.lt.s32.totalorder %v280, 128
  %vm297 = vcmp.lt.s32.totalorder %v281, 128
  %vm298 = vcmp.lt.s32.totalorder %v282, 128
  %vm299 = vcmp.lt.s32.totalorder %v283, 128
  %vm300 = vcmp.lt.s32.totalorder %v284, 128
  %vm301 = vcmp.lt.s32.totalorder %v285, 128
  %vm302 = vcmp.lt.s32.totalorder %v286, 128
  %vm303 = vcmp.lt.s32.totalorder %v287, 128
  %vm304 = vcmp.lt.s32.totalorder %v288, 128
  %vm305 = vcmp.lt.s32.totalorder %v289, 128
  %v306 = vsel %vm290, 1, 0
  %v307 = vsel %vm291, 1, 0
  %v308 = vsel %vm292, 1, 0
  %v309 = vsel %vm293, 1, 0
  %v310 = vsel %vm294, 1, 0
  %v311 = vsel %vm295, 1, 0
  %v312 = vsel %vm296, 1, 0
  %v313 = vsel %vm297, 1, 0
  %v314 = vsel %vm298, 1, 0
  %v315 = vsel %vm299, 1, 0
  %v316 = vsel %vm300, 1, 0
  %v317 = vsel %vm301, 1, 0
  %v318 = vsel %vm302, 1, 0
  %v319 = vsel %vm303, 1, 0
  %v320 = vsel %vm304, 1, 0
  %v321 = vsel %vm305, 1, 0
  %v322 = vcvt.s32.f32 %v306
  %v323 = vcvt.s32.f32 %v307
  %v324 = vcvt.s32.f32 %v308
  %v325 = vcvt.s32.f32 %v309
  %v326 = vcvt.s32.f32 %v310
  %v327 = vcvt.s32.f32 %v311
  %v328 = vcvt.s32.f32 %v312
  %v329 = vcvt.s32.f32 %v313
  %v330 = vcvt.s32.f32 %v314
  %v331 = vcvt.s32.f32 %v315
  %v332 = vcvt.s32.f32 %v316
  %v333 = vcvt.s32.f32 %v317
  %v334 = vcvt.s32.f32 %v318
  %v335 = vcvt.s32.f32 %v319
  %v336 = vcvt.s32.f32 %v320
  %v337 = vcvt.s32.f32 %v321
  %v338 = vmul.f32 %v177, %v322
  %v339 = vmul.f32 %v180, %v323
  %v340 = vmul.f32 %v185, %v324
  %v341 = vmul.f32 %v188, %v325
  %v342 = vmul.f32 %v193, %v326
  %v343 = vmul.f32 %v196, %v327
  %v344 = vmul.f32 %v201, %v328
  %v345 = vmul.f32 %v204, %v329
  %v346 = vmul.f32 %v209, %v330
  %v347 = vmul.f32 %v212, %v331
  %v348 = vmul.f32 %v217, %v332
  %v349 = vmul.f32 %v220, %v333
  %v350 = vmul.f32 %v225, %v334
  %v351 = vmul.f32 %v228, %v335
  %v352 = vmul.f32 %v233, %v336
  %v353 = vmul.f32 %v236, %v337
  %v354 = vadd.f32 %v338, %v339
  %v355 = vadd.f32 %v354, %v340
  %v356 = vadd.f32 %v355, %v341
  %v357 = vadd.f32 %v356, %v342
  %v358 = vadd.f32 %v357, %v343
  %v359 = vadd.f32 %v358, %v344
  %v360 = vadd.f32 %v359, %v345
  %v361 = vadd.f32 %v360, %v346
  %v362 = vadd.f32 %v361, %v347
  %v363 = vadd.f32 %v362, %v348
  %v364 = vadd.f32 %v363, %v349
  %v365 = vadd.f32 %v364, %v350
  %v366 = vadd.f32 %v365, %v351
  %v367 = vadd.f32 %v366, %v352
  %v368 = vadd.f32 %v367, %v353
  %v369 = vrot.slane %v368, 4
  %v370 = vadd.f32 %v368, %v369
  %v371 = vrot.slane %v370, 2
  %v372 = vadd.f32 %v370, %v371
  %v373 = vrot.slane %v372, 1
  %v374 = vadd.f32 %v372, %v373
  %v375 = vmul.f32 %v338, %v177
  %v376 = vmul.f32 %v339, %v180
  %v377 = vmul.f32 %v340, %v185
  %v378 = vmul.f32 %v341, %v188
  %v379 = vmul.f32 %v342, %v193
  %v380 = vmul.f32 %v343, %v196
  %v381 = vmul.f32 %v344, %v201
  %v382 = vmul.f32 %v345, %v204
  %v383 = vmul.f32 %v346, %v209
  %v384 = vmul.f32 %v347, %v212
  %v385 = vmul.f32 %v348, %v217
  %v386 = vmul.f32 %v349, %v220
  %v387 = vmul.f32 %v350, %v225
  %v388 = vmul.f32 %v351, %v228
  %v389 = vmul.f32 %v352, %v233
  %v390 = vmul.f32 %v353, %v236
  %v391 = vadd.f32 %v375, %v376
  %v392 = vadd.f32 %v391, %v377
  %v393 = vadd.f32 %v392, %v378
  %v394 = vadd.f32 %v393, %v379
  %v395 = vadd.f32 %v394, %v380
  %v396 = vadd.f32 %v395, %v381
  %v397 = vadd.f32 %v396, %v382
  %v398 = vadd.f32 %v397, %v383
  %v399 = vadd.f32 %v398, %v384
  %v400 = vadd.f32 %v399, %v385
  %v401 = vadd.f32 %v400, %v386
  %v402 = vadd.f32 %v401, %v387
  %v403 = vadd.f32 %v402, %v388
  %v404 = vadd.f32 %v403, %v389
  %v405 = vadd.f32 %v404, %v390
  %v406 = vrot.slane %v405, 4
  %v407 = vadd.f32 %v405, %v406
  %v408 = vrot.slane %v407, 2
  %v409 = vadd.f32 %v407, %v408
  %v410 = vrot.slane %v409, 1
  %v411 = vadd.f32 %v409, %v410
  %vm412 = vcmask 1040384
  %v413 = vsel %vm412, %v374, %v411
  %vm414 = vcmask 1041408
  %v415 = vsel %vm414, %v413, 0.0
  %416 = vst [vmem:[%s3] sm:$0xff] %v415
  // Predicated region
  $region10: #{_lambda_.5} parent=0 // pred_check
    _
  $region11: #{_lambda_.5} parent=0 // pred_check_branch
    %418 = sbr.rel (0) target = $region13
  $region12: #{_lambda_.5} parent=0 // pred_region
    _
  $region13: #{_lambda_.5} parent=0 // pred_fallthru
    _
  // Predicated region
  $region14: #{_lambda_.5} parent=0 // pred_check
    _
  $region15: #{_lambda_.5} parent=0 // pred_check_branch
    %420 = sbr.rel (0) target = $region17
  $region16: #{_lambda_.5} parent=0 // pred_region
    _
  $region17: #{_lambda_.5} parent=0 // pred_fallthru
    _
  // Predicated region
  $region18: #{_lambda_.5} parent=0 // pred_check
    _
  $region19: #{_lambda_.5} parent=0 // pred_check_branch
    %422 = sbr.rel (0) target = $region21
  $region20: #{_lambda_.5} parent=0 // pred_region
    _
  $region21: #{_lambda_.5} parent=0 // pred_fallthru
    _
  // Predicated region
  $region22: #{_lambda_.5} parent=0 // pred_check
    _
  $region23: #{_lambda_.5} parent=0 // pred_check_branch
    %424 = sbr.rel (0) target = $region25
  $region24: #{_lambda_.5} parent=0 // pred_region
    _
  $region25: #{_lambda_.5} parent=0 // pred_fallthru
    _

// kernel: _lambda_.8
$region0: #{_lambda_.8}
  #allocation0 [shape = 'u32[]', space=smem, size = 0x4, offset = 0x4, fixed_abs, tag = 'smem constant byte address 0x4 - core index']
  #allocation1 [shape = 'u32[144,128]{1,0:T(1,128)}', space=vmem, size = 0x12000, scoped, tag = 'internal scratch']
  %s0 = inlined_call_operand.vmem [shape: f32[32,128], index: 0, kind: input, shape index: {}]
  %s1 = inlined_call_operand.vmem [shape: f32[1,128], index: 1, kind: input, shape index: {}]
  %s2 = inlined_call_operand.vmem [shape: f32[1,128], index: 2, kind: input, shape index: {}]
  %s3 = inlined_call_operand.vmem [shape: f32[32,128], index: 3, kind: output, shape index: {}]
  %s4 = sld [smem:[#allocation0]]
  $region22: #{_lambda_.8} parent=0
    _
  %s6 = ssub.s32 1, %s4
  %s7 = scalar_select 0, %s6, %s4
  // Predicated region
  $region2: #{_lambda_.8} parent=0 // pred_check
    _
  $region3: #{_lambda_.8} parent=0 // pred_check_branch
    %9 = sbr.rel (0) target = $region5
  $region4: #{_lambda_.8} parent=0 // pred_region
    _
  $region5: #{_lambda_.8} parent=0 // pred_fallthru
    _
  // Predicated region
  $region6: #{_lambda_.8} parent=0 // pred_check
    _
  $region7: #{_lambda_.8} parent=0 // pred_check_branch
    %11 = sbr.rel (0) target = $region9
  $region8: #{_lambda_.8} parent=0 // pred_region
    _
  $region9: #{_lambda_.8} parent=0 // pred_fallthru
    _
  // Predicated region
  $region10: #{_lambda_.8} parent=0 // pred_check
    _
  $region11: #{_lambda_.8} parent=0 // pred_check_branch
    %13 = sbr.rel (0) target = $region13
  $region12: #{_lambda_.8} parent=0 // pred_region
    _
  $region13: #{_lambda_.8} parent=0 // pred_fallthru
    _
  %v14 = vld [vmem:[%s0] sm:$0xff]
  %v15 = vld [vmem:[%s0 + $0x8] sm:$0xff]
  %v16 = vld [vmem:[%s0 + $0x10] sm:$0xff]
  %v17 = vld [vmem:[%s0 + $0x18] sm:$0xff]
  %v18 = vld [vmem:[%s1] sm:$0x1]
  %v20 = vlaneseq
  %v21 = vshrl.u32 %v20, 7
  %v22 = vsub.s32 0, %v21
  %v23 = vrot.slane %v18, %v22
  %v25 = vmul.f32 %v14, %v23
  %v26 = vmul.f32 %v15, %v23
  %v27 = vmul.f32 %v16, %v23
  %v28 = vmul.f32 %v17, %v23
  %v29 = vld [vmem:[%s2] sm:$0x1]
  %v31 = vlaneseq
  %v32 = vshrl.u32 %v31, 7
  %v33 = vsub.s32 0, %v32
  %v34 = vrot.slane %v29, %v33
  %v36 = vadd.f32 %v25, %v34
  %v37 = vadd.f32 %v26, %v34
  %v38 = vadd.f32 %v27, %v34
  %v39 = vadd.f32 %v28, %v34
  %vm40 = vcmp.gt.f32.partialorder %v36, 0.0
  %vm41 = vcmp.gt.f32.partialorder %v37, 0.0
  %vm42 = vcmp.gt.f32.partialorder %v38, 0.0
  %vm43 = vcmp.gt.f32.partialorder %v39, 0.0
  %v44 = vmul.f32 %v36, 0.2
  %v45 = vmul.f32 %v37, 0.2
  %v46 = vmul.f32 %v38, 0.2
  %v47 = vmul.f32 %v39, 0.2
  %v48 = vsel %vm40, %v36, %v44
  %v49 = vsel %vm41, %v37, %v45
  %v50 = vsel %vm42, %v38, %v46
  %v51 = vsel %vm43, %v39, %v47
  %52 = vst [vmem:[%s3] sm:$0xff] %v48
  %53 = vst [vmem:[%s3 + $0x8] sm:$0xff] %v49
  %54 = vst [vmem:[%s3 + $0x10] sm:$0xff] %v50
  %55 = vst [vmem:[%s3 + $0x18] sm:$0xff] %v51
  // Predicated region
  $region14: #{_lambda_.8} parent=0 // pred_check
    _
  $region15: #{_lambda_.8} parent=0 // pred_check_branch
    %57 = sbr.rel (0) target = $region17
  $region16: #{_lambda_.8} parent=0 // pred_region
    _
  $region17: #{_lambda_.8} parent=0 // pred_fallthru
    _
  // Predicated region
  $region18: #{_lambda_.8} parent=0 // pred_check
    _
  $region19: #{_lambda_.8} parent=0 // pred_check_branch
    %59 = sbr.rel (0) target = $region21
  $region20: #{_lambda_.8} parent=0 // pred_region
    _
  $region21: #{_lambda_.8} parent=0 // pred_fallthru
    _

// kernel: _lambda_.7
$region0: #{_lambda_.7}
  #allocation0 [shape = 'u32[]', space=smem, size = 0x4, offset = 0x4, fixed_abs, tag = 'smem constant byte address 0x4 - core index']
  #allocation1 [shape = 'u32[144,128]{1,0:T(1,128)}', space=vmem, size = 0x12000, scoped, tag = 'internal scratch']
  %s0 = inlined_call_operand.vmem [shape: bf16[32,1024], index: 0, kind: input, shape index: {}]
  %s1 = inlined_call_operand.vmem [shape: bf16[1024,128], index: 1, kind: input, shape index: {}]
  %s2 = inlined_call_operand.vmem [shape: f32[32,128], index: 2, kind: output, shape index: {0}]
  %s3 = inlined_call_operand.vmem [shape: f32[1,8,128], index: 3, kind: output, shape index: {1}]
  %4 = xla_tuple %s2, %s3
  %s5 = sld [smem:[#allocation0]]
  $region26: #{_lambda_.7} parent=0
    _
  %s7 = ssub.s32 1, %s5
  %s8 = scalar_select 0, %s7, %s5
  // Predicated region
  $region2: #{_lambda_.7} parent=0 // pred_check
    _
  $region3: #{_lambda_.7} parent=0 // pred_check_branch
    %10 = sbr.rel (0) target = $region5
  $region4: #{_lambda_.7} parent=0 // pred_region
    _
  $region5: #{_lambda_.7} parent=0 // pred_fallthru
    _
  // Predicated region
  $region6: #{_lambda_.7} parent=0 // pred_check
    _
  $region7: #{_lambda_.7} parent=0 // pred_check_branch
    %12 = sbr.rel (0) target = $region9
  $region8: #{_lambda_.7} parent=0 // pred_region
    _
  $region9: #{_lambda_.7} parent=0 // pred_fallthru
    _
  %v14 = vld [vmem:[%s0] sm:$0xff]
  %v15 = vld [vmem:[%s0 + $0x8] sm:$0xff]
  %v16 = vld [vmem:[%s0 + $0x10] sm:$0xff]
  %v17 = vld [vmem:[%s0 + $0x18] sm:$0xff]
  %v18 = vld [vmem:[%s0 + $0x20] sm:$0xff]
  %v19 = vld [vmem:[%s0 + $0x28] sm:$0xff]
  %v20 = vld [vmem:[%s0 + $0x30] sm:$0xff]
  %v21 = vld [vmem:[%s0 + $0x38] sm:$0xff]
  %v22 = vld [vmem:[%s0 + $0x40] sm:$0xff]
  %v23 = vld [vmem:[%s0 + $0x48] sm:$0xff]
  %v24 = vld [vmem:[%s0 + $0x50] sm:$0xff]
  %v25 = vld [vmem:[%s0 + $0x58] sm:$0xff]
  %v26 = vld [vmem:[%s0 + $0x60] sm:$0xff]
  %v27 = vld [vmem:[%s0 + $0x68] sm:$0xff]
  %v28 = vld [vmem:[%s0 + $0x70] sm:$0xff]
  %v29 = vld [vmem:[%s0 + $0x78] sm:$0xff]
  %v30 = vld [vmem:[%s1] sm:$0xf]
  %v31 = vld [vmem:[%s1 + $0x4] sm:$0xf]
  %v32 = vld [vmem:[%s1 + $0x8] sm:$0xf]
  %v33 = vld [vmem:[%s1 + $0xc] sm:$0xf]
  %v34 = vld [vmem:[%s1 + $0x10] sm:$0xf]
  %v35 = vld [vmem:[%s1 + $0x14] sm:$0xf]
  %v36 = vld [vmem:[%s1 + $0x18] sm:$0xf]
  %v37 = vld [vmem:[%s1 + $0x1c] sm:$0xf]
  %v38 = vld [vmem:[%s1 + $0x20] sm:$0xf]
  %v39 = vld [vmem:[%s1 + $0x24] sm:$0xf]
  %v40 = vld [vmem:[%s1 + $0x28] sm:$0xf]
  %v41 = vld [vmem:[%s1 + $0x2c] sm:$0xf]
  %v42 = vld [vmem:[%s1 + $0x30] sm:$0xf]
  %v43 = vld [vmem:[%s1 + $0x34] sm:$0xf]
  %v44 = vld [vmem:[%s1 + $0x38] sm:$0xf]
  %v45 = vld [vmem:[%s1 + $0x3c] sm:$0xf]
  %v46 = vld [vmem:[%s1 + $0x40] sm:$0xf]
  %v47 = vld [vmem:[%s1 + $0x44] sm:$0xf]
  %v48 = vld [vmem:[%s1 + $0x48] sm:$0xf]
  %v49 = vld [vmem:[%s1 + $0x4c] sm:$0xf]
  %v50 = vld [vmem:[%s1 + $0x50] sm:$0xf]
  %v51 = vld [vmem:[%s1 + $0x54] sm:$0xf]
  %v52 = vld [vmem:[%s1 + $0x58] sm:$0xf]
  %v53 = vld [vmem:[%s1 + $0x5c] sm:$0xf]
  %v54 = vld [vmem:[%s1 + $0x60] sm:$0xf]
  %v55 = vld [vmem:[%s1 + $0x64] sm:$0xf]
  %v56 = vld [vmem:[%s1 + $0x68] sm:$0xf]
  %v57 = vld [vmem:[%s1 + $0x6c] sm:$0xf]
  %v58 = vld [vmem:[%s1 + $0x70] sm:$0xf]
  %v59 = vld [vmem:[%s1 + $0x74] sm:$0xf]
  %v60 = vld [vmem:[%s1 + $0x78] sm:$0xf]
  %v61 = vld [vmem:[%s1 + $0x7c] sm:$0xf]
  %v62 = vld [vmem:[%s1 + $0x80] sm:$0xf]
  %v63 = vld [vmem:[%s1 + $0x84] sm:$0xf]
  %v64 = vld [vmem:[%s1 + $0x88] sm:$0xf]
  %v65 = vld [vmem:[%s1 + $0x8c] sm:$0xf]
  %v66 = vld [vmem:[%s1 + $0x90] sm:$0xf]
  %v67 = vld [vmem:[%s1 + $0x94] sm:$0xf]
  %v68 = vld [vmem:[%s1 + $0x98] sm:$0xf]
  %v69 = vld [vmem:[%s1 + $0x9c] sm:$0xf]
  %v70 = vld [vmem:[%s1 + $0xa0] sm:$0xf]
  %v71 = vld [vmem:[%s1 + $0xa4] sm:$0xf]
  %v72 = vld [vmem:[%s1 + $0xa8] sm:$0xf]
  %v73 = vld [vmem:[%s1 + $0xac] sm:$0xf]
  %v74 = vld [vmem:[%s1 + $0xb0] sm:$0xf]
  %v75 = vld [vmem:[%s1 + $0xb4] sm:$0xf]
  %v76 = vld [vmem:[%s1 + $0xb8] sm:$0xf]
  %v77 = vld [vmem:[%s1 + $0xbc] sm:$0xf]
  %v78 = vld [vmem:[%s1 + $0xc0] sm:$0xf]
  %v79 = vld [vmem:[%s1 + $0xc4] sm:$0xf]
  %v80 = vld [vmem:[%s1 + $0xc8] sm:$0xf]
  %v81 = vld [vmem:[%s1 + $0xcc] sm:$0xf]
  %v82 = vld [vmem:[%s1 + $0xd0] sm:$0xf]
  %v83 = vld [vmem:[%s1 + $0xd4] sm:$0xf]
  %v84 = vld [vmem:[%s1 + $0xd8] sm:$0xf]
  %v85 = vld [vmem:[%s1 + $0xdc] sm:$0xf]
  %v86 = vld [vmem:[%s1 + $0xe0] sm:$0xf]
  %v87 = vld [vmem:[%s1 + $0xe4] sm:$0xf]
  %v88 = vld [vmem:[%s1 + $0xe8] sm:$0xf]
  %v89 = vld [vmem:[%s1 + $0xec] sm:$0xf]
  %v90 = vld [vmem:[%s1 + $0xf0] sm:$0xf]
  %v91 = vld [vmem:[%s1 + $0xf4] sm:$0xf]
  %v92 = vld [vmem:[%s1 + $0xf8] sm:$0xf]
  %v93 = vld [vmem:[%s1 + $0xfc] sm:$0xf]
  %v94 = vld [vmem:[%s1 + $0x100] sm:$0xf]
  %v95 = vld [vmem:[%s1 + $0x104] sm:$0xf]
  %v96 = vld [vmem:[%s1 + $0x108] sm:$0xf]
  %v97 = vld [vmem:[%s1 + $0x10c] sm:$0xf]
  %v98 = vld [vmem:[%s1 + $0x110] sm:$0xf]
  %v99 = vld [vmem:[%s1 + $0x114] sm:$0xf]
  %v100 = vld [vmem:[%s1 + $0x118] sm:$0xf]
  %v101 = vld [vmem:[%s1 + $0x11c] sm:$0xf]
  %v102 = vld [vmem:[%s1 + $0x120] sm:$0xf]
  %v103 = vld [vmem:[%s1 + $0x124] sm:$0xf]
  %v104 = vld [vmem:[%s1 + $0x128] sm:$0xf]
  %v105 = vld [vmem:[%s1 + $0x12c] sm:$0xf]
  %v106 = vld [vmem:[%s1 + $0x130] sm:$0xf]
  %v107 = vld [vmem:[%s1 + $0x134] sm:$0xf]
  %v108 = vld [vmem:[%s1 + $0x138] sm:$0xf]
  %v109 = vld [vmem:[%s1 + $0x13c] sm:$0xf]
  %v110 = vld [vmem:[%s1 + $0x140] sm:$0xf]
  %v111 = vld [vmem:[%s1 + $0x144] sm:$0xf]
  %v112 = vld [vmem:[%s1 + $0x148] sm:$0xf]
  %v113 = vld [vmem:[%s1 + $0x14c] sm:$0xf]
  %v114 = vld [vmem:[%s1 + $0x150] sm:$0xf]
  %v115 = vld [vmem:[%s1 + $0x154] sm:$0xf]
  %v116 = vld [vmem:[%s1 + $0x158] sm:$0xf]
  %v117 = vld [vmem:[%s1 + $0x15c] sm:$0xf]
  %v118 = vld [vmem:[%s1 + $0x160] sm:$0xf]
  %v119 = vld [vmem:[%s1 + $0x164] sm:$0xf]
  %v120 = vld [vmem:[%s1 + $0x168] sm:$0xf]
  %v121 = vld [vmem:[%s1 + $0x16c] sm:$0xf]
  %v122 = vld [vmem:[%s1 + $0x170] sm:$0xf]
  %v123 = vld [vmem:[%s1 + $0x174] sm:$0xf]
  %v124 = vld [vmem:[%s1 + $0x178] sm:$0xf]
  %v125 = vld [vmem:[%s1 + $0x17c] sm:$0xf]
  %v126 = vld [vmem:[%s1 + $0x180] sm:$0xf]
  %v127 = vld [vmem:[%s1 + $0x184] sm:$0xf]
  %v128 = vld [vmem:[%s1 + $0x188] sm:$0xf]
  %v129 = vld [vmem:[%s1 + $0x18c] sm:$0xf]
  %v130 = vld [vmem:[%s1 + $0x190] sm:$0xf]
  %v131 = vld [vmem:[%s1 + $0x194] sm:$0xf]
  %v132 = vld [vmem:[%s1 + $0x198] sm:$0xf]
  %v133 = vld [vmem:[%s1 + $0x19c] sm:$0xf]
  %v134 = vld [vmem:[%s1 + $0x1a0] sm:$0xf]
  %v135 = vld [vmem:[%s1 + $0x1a4] sm:$0xf]
  %v136 = vld [vmem:[%s1 + $0x1a8] sm:$0xf]
  %v137 = vld [vmem:[%s1 + $0x1ac] sm:$0xf]
  %v138 = vld [vmem:[%s1 + $0x1b0] sm:$0xf]
  %v139 = vld [vmem:[%s1 + $0x1b4] sm:$0xf]
  %v140 = vld [vmem:[%s1 + $0x1b8] sm:$0xf]
  %v141 = vld [vmem:[%s1 + $0x1bc] sm:$0xf]
  %v142 = vld [vmem:[%s1 + $0x1c0] sm:$0xf]
  %v143 = vld [vmem:[%s1 + $0x1c4] sm:$0xf]
  %v144 = vld [vmem:[%s1 + $0x1c8] sm:$0xf]
  %v145 = vld [vmem:[%s1 + $0x1cc] sm:$0xf]
  %v146 = vld [vmem:[%s1 + $0x1d0] sm:$0xf]
  %v147 = vld [vmem:[%s1 + $0x1d4] sm:$0xf]
  %v148 = vld [vmem:[%s1 + $0x1d8] sm:$0xf]
  %v149 = vld [vmem:[%s1 + $0x1dc] sm:$0xf]
  %v150 = vld [vmem:[%s1 + $0x1e0] sm:$0xf]
  %v151 = vld [vmem:[%s1 + $0x1e4] sm:$0xf]
  %v152 = vld [vmem:[%s1 + $0x1e8] sm:$0xf]
  %v153 = vld [vmem:[%s1 + $0x1ec] sm:$0xf]
  %v154 = vld [vmem:[%s1 + $0x1f0] sm:$0xf]
  %v155 = vld [vmem:[%s1 + $0x1f4] sm:$0xf]
  %v156 = vld [vmem:[%s1 + $0x1f8] sm:$0xf]
  %v157 = vld [vmem:[%s1 + $0x1fc] sm:$0xf]
  %v174 = vunpack.c.l.b16 %v14
  %v175 = vunpack.c.h.b16 %v14
  %v176 = vunpack.c.l.b16 %v15
  %v177 = vunpack.c.h.b16 %v15
  %v178 = vunpack.c.l.b16 %v16
  %v179 = vunpack.c.h.b16 %v16
  %v180 = vunpack.c.l.b16 %v17
  %v181 = vunpack.c.h.b16 %v17
  %v182 = vunpack.c.l.b16 %v18
  %v183 = vunpack.c.h.b16 %v18
  %v184 = vunpack.c.l.b16 %v19
  %v185 = vunpack.c.h.b16 %v19
  %v186 = vunpack.c.l.b16 %v20
  %v187 = vunpack.c.h.b16 %v20
  %v188 = vunpack.c.l.b16 %v21
  %v189 = vunpack.c.h.b16 %v21
  %v190 = vunpack.c.l.b16 %v22
  %v191 = vunpack.c.h.b16 %v22
  %v192 = vunpack.c.l.b16 %v23
  %v193 = vunpack.c.h.b16 %v23
  %v194 = vunpack.c.l.b16 %v24
  %v195 = vunpack.c.h.b16 %v24
  %v196 = vunpack.c.l.b16 %v25
  %v197 = vunpack.c.h.b16 %v25
  %v198 = vunpack.c.l.b16 %v26
  %v199 = vunpack.c.h.b16 %v26
  %v200 = vunpack.c.l.b16 %v27
  %v201 = vunpack.c.h.b16 %v27
  %v202 = vunpack.c.l.b16 %v28
  %v203 = vunpack.c.h.b16 %v28
  %v204 = vunpack.c.l.b16 %v29
  %v205 = vunpack.c.h.b16 %v29
  %v206 = vpack.c.b16 %v182, %v174
  %v207 = vpack.c.b16 %v183, %v175
  %v208 = vpack.c.b16 %v184, %v176
  %v209 = vpack.c.b16 %v185, %v177
  %v210 = vpack.c.b16 %v186, %v178
  %v211 = vpack.c.b16 %v187, %v179
  %v212 = vpack.c.b16 %v188, %v180
  %v213 = vpack.c.b16 %v189, %v181
  %v214 = vpack.c.b16 %v198, %v190
  %v215 = vpack.c.b16 %v199, %v191
  %v216 = vpack.c.b16 %v200, %v192
  %v217 = vpack.c.b16 %v201, %v193
  %v218 = vpack.c.b16 %v202, %v194
  %v219 = vpack.c.b16 %v203, %v195
  %v220 = vpack.c.b16 %v204, %v196
  %v221 = vpack.c.b16 %v205, %v197
  %v366 = vunpack.c.l.b16 %v30
  %v367 = vunpack.c.l.b16 %v31
  %v368 = vunpack.c.l.b16 %v32
  %v369 = vunpack.c.l.b16 %v33
  %v370 = vunpack.c.l.b16 %v34
  %v371 = vunpack.c.l.b16 %v35
  %v372 = vunpack.c.l.b16 %v36
  %v373 = vunpack.c.l.b16 %v37
  %v374 = vunpack.c.l.b16 %v38
  %v375 = vunpack.c.l.b16 %v39
  %v376 = vunpack.c.l.b16 %v40
  %v377 = vunpack.c.l.b16 %v41
  %v378 = vunpack.c.l.b16 %v42
  %v379 = vunpack.c.l.b16 %v43
  %v380 = vunpack.c.l.b16 %v44
  %v381 = vunpack.c.l.b16 %v45
  %v382 = vunpack.c.l.b16 %v46
  %v383 = vunpack.c.l.b16 %v47
  %v384 = vunpack.c.l.b16 %v48
  %v385 = vunpack.c.l.b16 %v49
  %v386 = vunpack.c.l.b16 %v50
  %v387 = vunpack.c.l.b16 %v51
  %v388 = vunpack.c.l.b16 %v52
  %v389 = vunpack.c.l.b16 %v53
  %v390 = vunpack.c.l.b16 %v54
  %v391 = vunpack.c.l.b16 %v55
  %v392 = vunpack.c.l.b16 %v56
  %v393 = vunpack.c.l.b16 %v57
  %v394 = vunpack.c.l.b16 %v58
  %v395 = vunpack.c.l.b16 %v59
  %v396 = vunpack.c.l.b16 %v60
  %v397 = vunpack.c.l.b16 %v61
  %v398 = vunpack.c.l.b16 %v62
  %v399 = vunpack.c.l.b16 %v63
  %v400 = vunpack.c.l.b16 %v64
  %v401 = vunpack.c.l.b16 %v65
  %v402 = vunpack.c.l.b16 %v66
  %v403 = vunpack.c.l.b16 %v67
  %v404 = vunpack.c.l.b16 %v68
  %v405 = vunpack.c.l.b16 %v69
  %v406 = vunpack.c.l.b16 %v70
  %v407 = vunpack.c.l.b16 %v71
  %v408 = vunpack.c.l.b16 %v72
  %v409 = vunpack.c.l.b16 %v73
  %v410 = vunpack.c.l.b16 %v74
  %v411 = vunpack.c.l.b16 %v75
  %v412 = vunpack.c.l.b16 %v76
  %v413 = vunpack.c.l.b16 %v77
  %v414 = vunpack.c.l.b16 %v78
  %v415 = vunpack.c.l.b16 %v79
  %v416 = vunpack.c.l.b16 %v80
  %v417 = vunpack.c.l.b16 %v81
  %v418 = vunpack.c.l.b16 %v82
  %v419 = vunpack.c.l.b16 %v83
  %v420 = vunpack.c.l.b16 %v84
  %v421 = vunpack.c.l.b16 %v85
  %v422 = vunpack.c.l.b16 %v86
  %v423 = vunpack.c.l.b16 %v87
  %v424 = vunpack.c.l.b16 %v88
  %v425 = vunpack.c.l.b16 %v89
  %v426 = vunpack.c.l.b16 %v90
  %v427 = vunpack.c.l.b16 %v91
  %v428 = vunpack.c.l.b16 %v92
  %v429 = vunpack.c.l.b16 %v93
  %v430 = vunpack.c.l.b16 %v94
  %v431 = vunpack.c.l.b16 %v95
  %v432 = vunpack.c.l.b16 %v96
  %v433 = vunpack.c.l.b16 %v97
  %v434 = vunpack.c.l.b16 %v98
  %v435 = vunpack.c.l.b16 %v99
  %v436 = vunpack.c.l.b16 %v100
  %v437 = vunpack.c.l.b16 %v101
  %v438 = vunpack.c.l.b16 %v102
  %v439 = vunpack.c.l.b16 %v103
  %v440 = vunpack.c.l.b16 %v104
  %v441 = vunpack.c.l.b16 %v105
  %v442 = vunpack.c.l.b16 %v106
  %v443 = vunpack.c.l.b16 %v107
  %v444 = vunpack.c.l.b16 %v108
  %v445 = vunpack.c.l.b16 %v109
  %v446 = vunpack.c.l.b16 %v110
  %v447 = vunpack.c.l.b16 %v111
  %v448 = vunpack.c.l.b16 %v112
  %v449 = vunpack.c.l.b16 %v113
  %v450 = vunpack.c.l.b16 %v114
  %v451 = vunpack.c.l.b16 %v115
  %v452 = vunpack.c.l.b16 %v116
  %v453 = vunpack.c.l.b16 %v117
  %v454 = vunpack.c.l.b16 %v118
  %v455 = vunpack.c.l.b16 %v119
  %v456 = vunpack.c.l.b16 %v120
  %v457 = vunpack.c.l.b16 %v121
  %v458 = vunpack.c.l.b16 %v122
  %v459 = vunpack.c.l.b16 %v123
  %v460 = vunpack.c.l.b16 %v124
  %v461 = vunpack.c.l.b16 %v125
  %v462 = vunpack.c.l.b16 %v126
  %v463 = vunpack.c.l.b16 %v127
  %v464 = vunpack.c.l.b16 %v128
  %v465 = vunpack.c.l.b16 %v129
  %v466 = vunpack.c.l.b16 %v130
  %v467 = vunpack.c.l.b16 %v131
  %v468 = vunpack.c.l.b16 %v132
  %v469 = vunpack.c.l.b16 %v133
  %v470 = vunpack.c.l.b16 %v134
  %v471 = vunpack.c.l.b16 %v135
  %v472 = vunpack.c.l.b16 %v136
  %v473 = vunpack.c.l.b16 %v137
  %v474 = vunpack.c.l.b16 %v138
  %v475 = vunpack.c.l.b16 %v139
  %v476 = vunpack.c.l.b16 %v140
  %v477 = vunpack.c.l.b16 %v141
  %v478 = vunpack.c.l.b16 %v142
  %v479 = vunpack.c.l.b16 %v143
  %v480 = vunpack.c.l.b16 %v144
  %v481 = vunpack.c.l.b16 %v145
  %v482 = vunpack.c.l.b16 %v146
  %v483 = vunpack.c.l.b16 %v147
  %v484 = vunpack.c.l.b16 %v148
  %v485 = vunpack.c.l.b16 %v149
  %v486 = vunpack.c.l.b16 %v150
  %v487 = vunpack.c.l.b16 %v151
  %v488 = vunpack.c.l.b16 %v152
  %v489 = vunpack.c.l.b16 %v153
  %v490 = vunpack.c.l.b16 %v154
  %v491 = vunpack.c.l.b16 %v155
  %v492 = vunpack.c.l.b16 %v156
  %v493 = vunpack.c.l.b16 %v157
  %v494 = vpack.c.b16 %v367, %v366
  %v495 = vpack.c.b16 %v369, %v368
  %v496 = vpack.c.b16 %v371, %v370
  %v497 = vpack.c.b16 %v373, %v372
  %v498 = vpack.c.b16 %v375, %v374
  %v499 = vpack.c.b16 %v377, %v376
  %v500 = vpack.c.b16 %v379, %v378
  %v501 = vpack.c.b16 %v381, %v380
  %v502 = vpack.c.b16 %v383, %v382
  %v503 = vpack.c.b16 %v385, %v384
  %v504 = vpack.c.b16 %v387, %v386
  %v505 = vpack.c.b16 %v389, %v388
  %v506 = vpack.c.b16 %v391, %v390
  %v507 = vpack.c.b16 %v393, %v392
  %v508 = vpack.c.b16 %v395, %v394
  %v509 = vpack.c.b16 %v397, %v396
  %v510 = vpack.c.b16 %v399, %v398
  %v511 = vpack.c.b16 %v401, %v400
  %v512 = vpack.c.b16 %v403, %v402
  %v513 = vpack.c.b16 %v405, %v404
  %v514 = vpack.c.b16 %v407, %v406
  %v515 = vpack.c.b16 %v409, %v408
  %v516 = vpack.c.b16 %v411, %v410
  %v517 = vpack.c.b16 %v413, %v412
  %v518 = vpack.c.b16 %v415, %v414
  %v519 = vpack.c.b16 %v417, %v416
  %v520 = vpack.c.b16 %v419, %v418
  %v521 = vpack.c.b16 %v421, %v420
  %v522 = vpack.c.b16 %v423, %v422
  %v523 = vpack.c.b16 %v425, %v424
  %v524 = vpack.c.b16 %v427, %v426
  %v525 = vpack.c.b16 %v429, %v428
  %v526 = vpack.c.b16 %v431, %v430
  %v527 = vpack.c.b16 %v433, %v432
  %v528 = vpack.c.b16 %v435, %v434
  %v529 = vpack.c.b16 %v437, %v436
  %v530 = vpack.c.b16 %v439, %v438
  %v531 = vpack.c.b16 %v441, %v440
  %v532 = vpack.c.b16 %v443, %v442
  %v533 = vpack.c.b16 %v445, %v444
  %v534 = vpack.c.b16 %v447, %v446
  %v535 = vpack.c.b16 %v449, %v448
  %v536 = vpack.c.b16 %v451, %v450
  %v537 = vpack.c.b16 %v453, %v452
  %v538 = vpack.c.b16 %v455, %v454
  %v539 = vpack.c.b16 %v457, %v456
  %v540 = vpack.c.b16 %v459, %v458
  %v541 = vpack.c.b16 %v461, %v460
  %v542 = vpack.c.b16 %v463, %v462
  %v543 = vpack.c.b16 %v465, %v464
  %v544 = vpack.c.b16 %v467, %v466
  %v545 = vpack.c.b16 %v469, %v468
  %v546 = vpack.c.b16 %v471, %v470
  %v547 = vpack.c.b16 %v473, %v472
  %v548 = vpack.c.b16 %v475, %v474
  %v549 = vpack.c.b16 %v477, %v476
  %v550 = vpack.c.b16 %v479, %v478
  %v551 = vpack.c.b16 %v481, %v480
  %v552 = vpack.c.b16 %v483, %v482
  %v553 = vpack.c.b16 %v485, %v484
  %v554 = vpack.c.b16 %v487, %v486
  %v555 = vpack.c.b16 %v489, %v488
  %v556 = vpack.c.b16 %v491, %v490
  %v557 = vpack.c.b16 %v493, %v492
  %622 = vmatprep.subr.bf16.mxu0 0
  %623 = vmatpush1.bf16.msra.mxu0 %v494
  %624 = vmatprep.subr.bf16.mxu0 0
  %625 = vmatpush1.bf16.msra.mxu0 %v495
  %626 = vmatprep.subr.bf16.mxu0 0
  %627 = vmatpush1.bf16.msra.mxu0 %v496
  %628 = vmatprep.subr.bf16.mxu0 0
  %629 = vmatpush1.bf16.msra.mxu0 %v497
  %630 = vmatprep.subr.bf16.mxu0 0
  %631 = vmatpush1.bf16.msra.mxu0 %v498
  %632 = vmatprep.subr.bf16.mxu0 0
  %633 = vmatpush1.bf16.msra.mxu0 %v499
  %634 = vmatprep.subr.bf16.mxu0 0
  %635 = vmatpush1.bf16.msra.mxu0 %v500
  %636 = vmatprep.subr.bf16.mxu0 0
  %637 = vmatpush1.bf16.msra.mxu0 %v501
  %638 = vmatprep.subr.bf16.mxu0 0
  %639 = vmatpush1.bf16.msra.mxu0 %v502
  %640 = vmatprep.subr.bf16.mxu0 0
  %641 = vmatpush1.bf16.msra.mxu0 %v503
  %642 = vmatprep.subr.bf16.mxu0 0
  %643 = vmatpush1.bf16.msra.mxu0 %v504
  %644 = vmatprep.subr.bf16.mxu0 0
  %645 = vmatpush1.bf16.msra.mxu0 %v505
  %646 = vmatprep.subr.bf16.mxu0 0
  %647 = vmatpush1.bf16.msra.mxu0 %v506
  %648 = vmatprep.subr.bf16.mxu0 0
  %649 = vmatpush1.bf16.msra.mxu0 %v507
  %650 = vmatprep.subr.bf16.mxu0 0
  %651 = vmatpush1.bf16.msra.mxu0 %v508
  %652 = vmatprep.subr.bf16.mxu0 0
  %653 = vmatpush1.bf16.msra.mxu0 %v509
  %654 = vmatprep.mubr.bf16.mxu0 %v207
  %655 = vmatmul.mubr.bf16.gmra.mrb[0].mxu0 %v206
  %v656 = vpop.f32.mrb[0].mxu0
  %v657 = vadd.f32 0.0, %v656
  %v658 = vpop.f32.mrb[0].mxu0
  %v659 = vpop.f32.mrb[0].mxu0
  %v660 = vadd.f32 0.0, %v659
  %v661 = vpop.f32.mrb[0].mxu0
  %662 = vmatprep.mubr.bf16.mxu0 %v215
  %663 = vmatmul.mubr.bf16.gmra.mrb[0].mxu0 %v214
  %v664 = vpop.f32.mrb[0].mxu0
  %v665 = vadd.f32 0.0, %v664
  %v666 = vpop.f32.mrb[0].mxu0
  %v667 = vpop.f32.mrb[0].mxu0
  %v668 = vadd.f32 0.0, %v667
  %v669 = vpop.f32.mrb[0].mxu0
  %670 = vdwg.mxu0
  %671 = vmatprep.subr.bf16.mxu0 0
  %672 = vmatpush1.bf16.msra.mxu0 %v510
  %673 = vmatprep.subr.bf16.mxu0 0
  %674 = vmatpush1.bf16.msra.mxu0 %v511
  %675 = vmatprep.subr.bf16.mxu0 0
  %676 = vmatpush1.bf16.msra.mxu0 %v512
  %677 = vmatprep.subr.bf16.mxu0 0
  %678 = vmatpush1.bf16.msra.mxu0 %v513
  %679 = vmatprep.subr.bf16.mxu0 0
  %680 = vmatpush1.bf16.msra.mxu0 %v514
  %681 = vmatprep.subr.bf16.mxu0 0
  %682 = vmatpush1.bf16.msra.mxu0 %v515
  %683 = vmatprep.subr.bf16.mxu0 0
  %684 = vmatpush1.bf16.msra.mxu0 %v516
  %685 = vmatprep.subr.bf16.mxu0 0
  %686 = vmatpush1.bf16.msra.mxu0 %v517
  %687 = vmatprep.subr.bf16.mxu0 0
  %688 = vmatpush1.bf16.msra.mxu0 %v518
  %689 = vmatprep.subr.bf16.mxu0 0
  %690 = vmatpush1.bf16.msra.mxu0 %v519
  %691 = vmatprep.subr.bf16.mxu0 0
  %692 = vmatpush1.bf16.msra.mxu0 %v520
  %693 = vmatprep.subr.bf16.mxu0 0
  %694 = vmatpush1.bf16.msra.mxu0 %v521
  %695 = vmatprep.subr.bf16.mxu0 0
  %696 = vmatpush1.bf16.msra.mxu0 %v522
  %697 = vmatprep.subr.bf16.mxu0 0
  %698 = vmatpush1.bf16.msra.mxu0 %v523
  %699 = vmatprep.subr.bf16.mxu0 0
  %700 = vmatpush1.bf16.msra.mxu0 %v524
  %701 = vmatprep.subr.bf16.mxu0 0
  %702 = vmatpush1.bf16.msra.mxu0 %v525
  %703 = vmatprep.mubr.bf16.mxu0 %v209
  %704 = vmatmul.mubr.bf16.gmra.mrb[0].mxu0 %v208
  %v705 = vpop.f32.mrb[0].mxu0
  %v706 = vadd.f32 %v657, %v705
  %v707 = vpop.f32.mrb[0].mxu0
  %v708 = vpop.f32.mrb[0].mxu0
  %v709 = vadd.f32 %v660, %v708
  %v710 = vpop.f32.mrb[0].mxu0
  %711 = vmatprep.mubr.bf16.mxu0 %v217
  %712 = vmatmul.mubr.bf16.gmra.mrb[0].mxu0 %v216
  %v713 = vpop.f32.mrb[0].mxu0
  %v714 = vadd.f32 %v665, %v713
  %v715 = vpop.f32.mrb[0].mxu0
  %v716 = vpop.f32.mrb[0].mxu0
  %v717 = vadd.f32 %v668, %v716
  %v718 = vpop.f32.mrb[0].mxu0
  %719 = vdwg.mxu0
  %720 = vmatprep.subr.bf16.mxu0 0
  %721 = vmatpush1.bf16.msra.mxu0 %v526
  %722 = vmatprep.subr.bf16.mxu0 0
  %723 = vmatpush1.bf16.msra.mxu0 %v527
  %724 = vmatprep.subr.bf16.mxu0 0
  %725 = vmatpush1.bf16.msra.mxu0 %v528
  %726 = vmatprep.subr.bf16.mxu0 0
  %727 = vmatpush1.bf16.msra.mxu0 %v529
  %728 = vmatprep.subr.bf16.mxu0 0
  %729 = vmatpush1.bf16.msra.mxu0 %v530
  %730 = vmatprep.subr.bf16.mxu0 0
  %731 = vmatpush1.bf16.msra.mxu0 %v531
  %732 = vmatprep.subr.bf16.mxu0 0
  %733 = vmatpush1.bf16.msra.mxu0 %v532
  %734 = vmatprep.subr.bf16.mxu0 0
  %735 = vmatpush1.bf16.msra.mxu0 %v533
  %736 = vmatprep.subr.bf16.mxu0 0
  %737 = vmatpush1.bf16.msra.mxu0 %v534
  %738 = vmatprep.subr.bf16.mxu0 0
  %739 = vmatpush1.bf16.msra.mxu0 %v535
  %740 = vmatprep.subr.bf16.mxu0 0
  %741 = vmatpush1.bf16.msra.mxu0 %v536
  %742 = vmatprep.subr.bf16.mxu0 0
  %743 = vmatpush1.bf16.msra.mxu0 %v537
  %744 = vmatprep.subr.bf16.mxu0 0
  %745 = vmatpush1.bf16.msra.mxu0 %v538
  %746 = vmatprep.subr.bf16.mxu0 0
  %747 = vmatpush1.bf16.msra.mxu0 %v539
  %748 = vmatprep.subr.bf16.mxu0 0
  %749 = vmatpush1.bf16.msra.mxu0 %v540
  %750 = vmatprep.subr.bf16.mxu0 0
  %751 = vmatpush1.bf16.msra.mxu0 %v541
  %752 = vmatprep.mubr.bf16.mxu0 %v211
  %753 = vmatmul.mubr.bf16.gmra.mrb[0].mxu0 %v210
  %v754 = vpop.f32.mrb[0].mxu0
  %v755 = vadd.f32 %v706, %v754
  %v756 = vpop.f32.mrb[0].mxu0
  %v757 = vpop.f32.mrb[0].mxu0
  %v758 = vadd.f32 %v709, %v757
  %v759 = vpop.f32.mrb[0].mxu0
  %760 = vmatprep.mubr.bf16.mxu0 %v219
  %761 = vmatmul.mubr.bf16.gmra.mrb[0].mxu0 %v218
  %v762 = vpop.f32.mrb[0].mxu0
  %v763 = vadd.f32 %v714, %v762
  %v764 = vpop.f32.mrb[0].mxu0
  %v765 = vpop.f32.mrb[0].mxu0
  %v766 = vadd.f32 %v717, %v765
  %v767 = vpop.f32.mrb[0].mxu0
  %768 = vdwg.mxu0
  %769 = vmatprep.subr.bf16.mxu0 0
  %770 = vmatpush1.bf16.msra.mxu0 %v542
  %771 = vmatprep.subr.bf16.mxu0 0
  %772 = vmatpush1.bf16.msra.mxu0 %v543
  %773 = vmatprep.subr.bf16.mxu0 0
  %774 = vmatpush1.bf16.msra.mxu0 %v544
  %775 = vmatprep.subr.bf16.mxu0 0
  %776 = vmatpush1.bf16.msra.mxu0 %v545
  %777 = vmatprep.subr.bf16.mxu0 0
  %778 = vmatpush1.bf16.msra.mxu0 %v546
  %779 = vmatprep.subr.bf16.mxu0 0
  %780 = vmatpush1.bf16.msra.mxu0 %v547
  %781 = vmatprep.subr.bf16.mxu0 0
  %782 = vmatpush1.bf16.msra.mxu0 %v548
  %783 = vmatprep.subr.bf16.mxu0 0
  %784 = vmatpush1.bf16.msra.mxu0 %v549
  %785 = vmatprep.subr.bf16.mxu0 0
  %786 = vmatpush1.bf16.msra.mxu0 %v550
  %787 = vmatprep.subr.bf16.mxu0 0
  %788 = vmatpush1.bf16.msra.mxu0 %v551
  %789 = vmatprep.subr.bf16.mxu0 0
  %790 = vmatpush1.bf16.msra.mxu0 %v552
  %791 = vmatprep.subr.bf16.mxu0 0
  %792 = vmatpush1.bf16.msra.mxu0 %v553
  %793 = vmatprep.subr.bf16.mxu0 0
  %794 = vmatpush1.bf16.msra.mxu0 %v554
  %795 = vmatprep.subr.bf16.mxu0 0
  %796 = vmatpush1.bf16.msra.mxu0 %v555
  %797 = vmatprep.subr.bf16.mxu0 0
  %798 = vmatpush1.bf16.msra.mxu0 %v556
  %799 = vmatprep.subr.bf16.mxu0 0
  %800 = vmatpush1.bf16.msra.mxu0 %v557
  %801 = vmatprep.mubr.bf16.mxu0 %v213
  %802 = vmatmul.mubr.bf16.gmra.mrb[0].mxu0 %v212
  %v803 = vpop.f32.mrb[0].mxu0
  %v804 = vadd.f32 %v755, %v803
  %v805 = vpop.f32.mrb[0].mxu0
  %v806 = vpop.f32.mrb[0].mxu0
  %v807 = vadd.f32 %v758, %v806
  %v808 = vpop.f32.mrb[0].mxu0
  %809 = vmatprep.mubr.bf16.mxu0 %v221
  %810 = vmatmul.mubr.bf16.gmra.mrb[0].mxu0 %v220
  %v811 = vpop.f32.mrb[0].mxu0
  %v812 = vadd.f32 %v763, %v811
  %v813 = vpop.f32.mrb[0].mxu0
  %v814 = vpop.f32.mrb[0].mxu0
  %v815 = vadd.f32 %v766, %v814
  %v816 = vpop.f32.mrb[0].mxu0
  %817 = vdwg.mxu0
  %818 = vst [vmem:[%s2] sm:$0xff] %v804
  %819 = vst [vmem:[%s2 + $0x8] sm:$0xff] %v807
  %820 = vst [vmem:[%s2 + $0x10] sm:$0xff] %v812
  %821 = vst [vmem:[%s2 + $0x18] sm:$0xff] %v815
  %v822 = vlaneseq
  %v823 = vshrl.u32 %v822, 7
  %v824 = vadd.s32 %v823, 8
  %v825 = vadd.s32 %v823, 16
  %v826 = vadd.s32 %v823, 24
  %s827 = smul.u32 0, 32
  %v828 = vstv %s827
  %v829 = vadd.s32 %v823, %v828
  %v830 = vadd.s32 %v824, %v828
  %v831 = vadd.s32 %v825, %v828
  %v832 = vadd.s32 %v826, %v828
  %vm833 = vcmp.lt.s32.totalorder %v829, 32
  %vm834 = vcmp.lt.s32.totalorder %v830, 32
  %vm835 = vcmp.lt.s32.totalorder %v831, 32
  %vm836 = vcmp.lt.s32.totalorder %v832, 32
  %v837 = vsel %vm833, 1, 0
  %v838 = vsel %vm834, 1, 0
  %v839 = vsel %vm835, 1, 0
  %v840 = vsel %vm836, 1, 0
  %v841 = vcvt.s32.f32 %v837
  %v842 = vcvt.s32.f32 %v838
  %v843 = vcvt.s32.f32 %v839
  %v844 = vcvt.s32.f32 %v840
  %v845 = vmul.f32 %v804, %v841
  %v846 = vmul.f32 %v807, %v842
  %v847 = vmul.f32 %v812, %v843
  %v848 = vmul.f32 %v815, %v844
  %v849 = vadd.f32 %v845, %v846
  %v850 = vadd.f32 %v849, %v847
  %v851 = vadd.f32 %v850, %v848
  %v852 = vrot.slane %v851, 4
  %v853 = vadd.f32 %v851, %v852
  %v854 = vrot.slane %v853, 2
  %v855 = vadd.f32 %v853, %v854
  %v856 = vrot.slane %v855, 1
  %v857 = vadd.f32 %v855, %v856
  %v858 = vmul.f32 %v845, %v804
  %v859 = vmul.f32 %v846, %v807
  %v860 = vmul.f32 %v847, %v812
  %v861 = vmul.f32 %v848, %v815
  %v862 = vadd.f32 %v858, %v859
  %v863 = vadd.f32 %v862, %v860
  %v864 = vadd.f32 %v863, %v861
  %v865 = vrot.slane %v864, 4
  %v866 = vadd.f32 %v864, %v865
  %v867 = vrot.slane %v866, 2
  %v868 = vadd.f32 %v866, %v867
  %v869 = vrot.slane %v868, 1
  %v870 = vadd.f32 %v868, %v869
  %vm871 = vcmask 1040384
  %v872 = vsel %vm871, %v857, %v870
  %vm873 = vcmask 1041408
  %v874 = vsel %vm873, %v872, 0.0
  %875 = vst [vmem:[%s3] sm:$0xff] %v874
  // Predicated region
  $region10: #{_lambda_.7} parent=0 // pred_check
    _
  $region11: #{_lambda_.7} parent=0 // pred_check_branch
    %877 = sbr.rel (0) target = $region13
  $region12: #{_lambda_.7} parent=0 // pred_region
    _
  $region13: #{_lambda_.7} parent=0 // pred_fallthru
    _
  // Predicated region
  $region14: #{_lambda_.7} parent=0 // pred_check
    _
  $region15: #{_lambda_.7} parent=0 // pred_check_branch
    %879 = sbr.rel (0) target = $region17
  $region16: #{_lambda_.7} parent=0 // pred_region
    _
  $region17: #{_lambda_.7} parent=0 // pred_fallthru
    _
  // Predicated region
  $region18: #{_lambda_.7} parent=0 // pred_check
    _
  $region19: #{_lambda_.7} parent=0 // pred_check_branch
    %881 = sbr.rel (0) target = $region21
  $region20: #{_lambda_.7} parent=0 // pred_region
    _
  $region21: #{_lambda_.7} parent=0 // pred_fallthru
    _
  // Predicated region
  $region22: #{_lambda_.7} parent=0 // pred_check
    _
  $region23: #{_lambda_.7} parent=0 // pred_check_branch
    %883 = sbr.rel (0) target = $region25
  $region24: #{_lambda_.7} parent=0 // pred_region
    _
  $region25: #{_lambda_.7} parent=0 // pred_fallthru
    _

// kernel: _lambda_.9
$region0: #{_lambda_.9}
  #allocation0 [shape = 'u32[]', space=smem, size = 0x4, offset = 0x4, fixed_abs, tag = 'smem constant byte address 0x4 - core index']
  #allocation1 [shape = 'u32[144,128]{1,0:T(1,128)}', space=vmem, size = 0x12000, scoped, tag = 'internal scratch']
  %s0 = inlined_call_operand.vmem [shape: bf16[8,2048], index: 0, kind: input, shape index: {}]
  %s1 = inlined_call_operand.vmem [shape: bf16[2048,128], index: 1, kind: input, shape index: {}]
  %s2 = inlined_call_operand.vmem [shape: f32[1,128], index: 2, kind: input, shape index: {}]
  %s3 = inlined_call_operand.vmem [shape: f32[1,128], index: 3, kind: input, shape index: {}]
  %s4 = inlined_call_operand.vmem [shape: f32[128,128], index: 4, kind: input, shape index: {}]
  %s5 = inlined_call_operand.vmem [shape: f32[1,128], index: 5, kind: input, shape index: {}]
  %s6 = inlined_call_operand.vmem [shape: f32[8,128], index: 6, kind: output, shape index: {}]
  %s7 = sld [smem:[#allocation0]]
  $region34: #{_lambda_.9} parent=0
    _
  %s9 = ssub.s32 1, %s7
  %s10 = scalar_select 0, %s9, %s7
  // Predicated region
  $region2: #{_lambda_.9} parent=0 // pred_check
    _
  $region3: #{_lambda_.9} parent=0 // pred_check_branch
    %12 = sbr.rel (0) target = $region5
  $region4: #{_lambda_.9} parent=0 // pred_region
    _
  $region5: #{_lambda_.9} parent=0 // pred_fallthru
    _
  // Predicated region
  $region6: #{_lambda_.9} parent=0 // pred_check
    _
  $region7: #{_lambda_.9} parent=0 // pred_check_branch
    %14 = sbr.rel (0) target = $region9
  $region8: #{_lambda_.9} parent=0 // pred_region
    _
  $region9: #{_lambda_.9} parent=0 // pred_fallthru
    _
  // Predicated region
  $region10: #{_lambda_.9} parent=0 // pred_check
    _
  $region11: #{_lambda_.9} parent=0 // pred_check_branch
    %16 = sbr.rel (0) target = $region13
  $region12: #{_lambda_.9} parent=0 // pred_region
    _
  $region13: #{_lambda_.9} parent=0 // pred_fallthru
    _
  // Predicated region
  $region14: #{_lambda_.9} parent=0 // pred_check
    _
  $region15: #{_lambda_.9} parent=0 // pred_check_branch
    %18 = sbr.rel (0) target = $region17
  $region16: #{_lambda_.9} parent=0 // pred_region
    _
  $region17: #{_lambda_.9} parent=0 // pred_fallthru
    _
  // Predicated region
  $region18: #{_lambda_.9} parent=0 // pred_check
    _
  $region19: #{_lambda_.9} parent=0 // pred_check_branch
    %20 = sbr.rel (0) target = $region21
  $region20: #{_lambda_.9} parent=0 // pred_region
    _
  $region21: #{_lambda_.9} parent=0 // pred_fallthru
    _
  // Predicated region
  $region22: #{_lambda_.9} parent=0 // pred_check
    _
  $region23: #{_lambda_.9} parent=0 // pred_check_branch
    %22 = sbr.rel (0) target = $region25
  $region24: #{_lambda_.9} parent=0 // pred_region
    _
  $region25: #{_lambda_.9} parent=0 // pred_fallthru
    _
  %v24 = vld [vmem:[%s0] sm:$0xff]
  %v25 = vld [vmem:[%s0 + $0x8] sm:$0xff]
  %v26 = vld [vmem:[%s0 + $0x10] sm:$0xff]
  %v27 = vld [vmem:[%s0 + $0x18] sm:$0xff]
  %v28 = vld [vmem:[%s0 + $0x20] sm:$0xff]
  %v29 = vld [vmem:[%s0 + $0x28] sm:$0xff]
  %v30 = vld [vmem:[%s0 + $0x30] sm:$0xff]
  %v31 = vld [vmem:[%s0 + $0x38] sm:$0xff]
  %v32 = vld [vmem:[%s1] sm:$0xf]
  %v33 = vld [vmem:[%s1 + $0x4] sm:$0xf]
  %v34 = vld [vmem:[%s1 + $0x8] sm:$0xf]
  %v35 = vld [vmem:[%s1 + $0xc] sm:$0xf]
  %v36 = vld [vmem:[%s1 + $0x10] sm:$0xf]
  %v37 = vld [vmem:[%s1 + $0x14] sm:$0xf]
  %v38 = vld [vmem:[%s1 + $0x18] sm:$0xf]
  %v39 = vld [vmem:[%s1 + $0x1c] sm:$0xf]
  %v40 = vld [vmem:[%s1 + $0x20] sm:$0xf]
  %v41 = vld [vmem:[%s1 + $0x24] sm:$0xf]
  %v42 = vld [vmem:[%s1 + $0x28] sm:$0xf]
  %v43 = vld [vmem:[%s1 + $0x2c] sm:$0xf]
  %v44 = vld [vmem:[%s1 + $0x30] sm:$0xf]
  %v45 = vld [vmem:[%s1 + $0x34] sm:$0xf]
  %v46 = vld [vmem:[%s1 + $0x38] sm:$0xf]
  %v47 = vld [vmem:[%s1 + $0x3c] sm:$0xf]
  %v48 = vld [vmem:[%s1 + $0x40] sm:$0xf]
  %v49 = vld [vmem:[%s1 + $0x44] sm:$0xf]
  %v50 = vld [vmem:[%s1 + $0x48] sm:$0xf]
  %v51 = vld [vmem:[%s1 + $0x4c] sm:$0xf]
  %v52 = vld [vmem:[%s1 + $0x50] sm:$0xf]
  %v53 = vld [vmem:[%s1 + $0x54] sm:$0xf]
  %v54 = vld [vmem:[%s1 + $0x58] sm:$0xf]
  %v55 = vld [vmem:[%s1 + $0x5c] sm:$0xf]
  %v56 = vld [vmem:[%s1 + $0x60] sm:$0xf]
  %v57 = vld [vmem:[%s1 + $0x64] sm:$0xf]
  %v58 = vld [vmem:[%s1 + $0x68] sm:$0xf]
  %v59 = vld [vmem:[%s1 + $0x6c] sm:$0xf]
  %v60 = vld [vmem:[%s1 + $0x70] sm:$0xf]
  %v61 = vld [vmem:[%s1 + $0x74] sm:$0xf]
  %v62 = vld [vmem:[%s1 + $0x78] sm:$0xf]
  %v63 = vld [vmem:[%s1 + $0x7c] sm:$0xf]
  %v64 = vld [vmem:[%s1 + $0x80] sm:$0xf]
  %v65 = vld [vmem:[%s1 + $0x84] sm:$0xf]
  %v66 = vld [vmem:[%s1 + $0x88] sm:$0xf]
  %v67 = vld [vmem:[%s1 + $0x8c] sm:$0xf]
  %v68 = vld [vmem:[%s1 + $0x90] sm:$0xf]
  %v69 = vld [vmem:[%s1 + $0x94] sm:$0xf]
  %v70 = vld [vmem:[%s1 + $0x98] sm:$0xf]
  %v71 = vld [vmem:[%s1 + $0x9c] sm:$0xf]
  %v72 = vld [vmem:[%s1 + $0xa0] sm:$0xf]
  %v73 = vld [vmem:[%s1 + $0xa4] sm:$0xf]
  %v74 = vld [vmem:[%s1 + $0xa8] sm:$0xf]
  %v75 = vld [vmem:[%s1 + $0xac] sm:$0xf]
  %v76 = vld [vmem:[%s1 + $0xb0] sm:$0xf]
  %v77 = vld [vmem:[%s1 + $0xb4] sm:$0xf]
  %v78 = vld [vmem:[%s1 + $0xb8] sm:$0xf]
  %v79 = vld [vmem:[%s1 + $0xbc] sm:$0xf]
  %v80 = vld [vmem:[%s1 + $0xc0] sm:$0xf]
  %v81 = vld [vmem:[%s1 + $0xc4] sm:$0xf]
  %v82 = vld [vmem:[%s1 + $0xc8] sm:$0xf]
  %v83 = vld [vmem:[%s1 + $0xcc] sm:$0xf]
  %v84 = vld [vmem:[%s1 + $0xd0] sm:$0xf]
  %v85 = vld [vmem:[%s1 + $0xd4] sm:$0xf]
  %v86 = vld [vmem:[%s1 + $0xd8] sm:$0xf]
  %v87 = vld [vmem:[%s1 + $0xdc] sm:$0xf]
  %v88 = vld [vmem:[%s1 + $0xe0] sm:$0xf]
  %v89 = vld [vmem:[%s1 + $0xe4] sm:$0xf]
  %v90 = vld [vmem:[%s1 + $0xe8] sm:$0xf]
  %v91 = vld [vmem:[%s1 + $0xec] sm:$0xf]
  %v92 = vld [vmem:[%s1 + $0xf0] sm:$0xf]
  %v93 = vld [vmem:[%s1 + $0xf4] sm:$0xf]
  %v94 = vld [vmem:[%s1 + $0xf8] sm:$0xf]
  %v95 = vld [vmem:[%s1 + $0xfc] sm:$0xf]
  %v96 = vld [vmem:[%s1 + $0x100] sm:$0xf]
  %v97 = vld [vmem:[%s1 + $0x104] sm:$0xf]
  %v98 = vld [vmem:[%s1 + $0x108] sm:$0xf]
  %v99 = vld [vmem:[%s1 + $0x10c] sm:$0xf]
  %v100 = vld [vmem:[%s1 + $0x110] sm:$0xf]
  %v101 = vld [vmem:[%s1 + $0x114] sm:$0xf]
  %v102 = vld [vmem:[%s1 + $0x118] sm:$0xf]
  %v103 = vld [vmem:[%s1 + $0x11c] sm:$0xf]
  %v104 = vld [vmem:[%s1 + $0x120] sm:$0xf]
  %v105 = vld [vmem:[%s1 + $0x124] sm:$0xf]
  %v106 = vld [vmem:[%s1 + $0x128] sm:$0xf]
  %v107 = vld [vmem:[%s1 + $0x12c] sm:$0xf]
  %v108 = vld [vmem:[%s1 + $0x130] sm:$0xf]
  %v109 = vld [vmem:[%s1 + $0x134] sm:$0xf]
  %v110 = vld [vmem:[%s1 + $0x138] sm:$0xf]
  %v111 = vld [vmem:[%s1 + $0x13c] sm:$0xf]
  %v112 = vld [vmem:[%s1 + $0x140] sm:$0xf]
  %v113 = vld [vmem:[%s1 + $0x144] sm:$0xf]
  %v114 = vld [vmem:[%s1 + $0x148] sm:$0xf]
  %v115 = vld [vmem:[%s1 + $0x14c] sm:$0xf]
  %v116 = vld [vmem:[%s1 + $0x150] sm:$0xf]
  %v117 = vld [vmem:[%s1 + $0x154] sm:$0xf]
  %v118 = vld [vmem:[%s1 + $0x158] sm:$0xf]
  %v119 = vld [vmem:[%s1 + $0x15c] sm:$0xf]
  %v120 = vld [vmem:[%s1 + $0x160] sm:$0xf]
  %v121 = vld [vmem:[%s1 + $0x164] sm:$0xf]
  %v122 = vld [vmem:[%s1 + $0x168] sm:$0xf]
  %v123 = vld [vmem:[%s1 + $0x16c] sm:$0xf]
  %v124 = vld [vmem:[%s1 + $0x170] sm:$0xf]
  %v125 = vld [vmem:[%s1 + $0x174] sm:$0xf]
  %v126 = vld [vmem:[%s1 + $0x178] sm:$0xf]
  %v127 = vld [vmem:[%s1 + $0x17c] sm:$0xf]
  %v128 = vld [vmem:[%s1 + $0x180] sm:$0xf]
  %v129 = vld [vmem:[%s1 + $0x184] sm:$0xf]
  %v130 = vld [vmem:[%s1 + $0x188] sm:$0xf]
  %v131 = vld [vmem:[%s1 + $0x18c] sm:$0xf]
  %v132 = vld [vmem:[%s1 + $0x190] sm:$0xf]
  %v133 = vld [vmem:[%s1 + $0x194] sm:$0xf]
  %v134 = vld [vmem:[%s1 + $0x198] sm:$0xf]
  %v135 = vld [vmem:[%s1 + $0x19c] sm:$0xf]
  %v136 = vld [vmem:[%s1 + $0x1a0] sm:$0xf]
  %v137 = vld [vmem:[%s1 + $0x1a4] sm:$0xf]
  %v138 = vld [vmem:[%s1 + $0x1a8] sm:$0xf]
  %v139 = vld [vmem:[%s1 + $0x1ac] sm:$0xf]
  %v140 = vld [vmem:[%s1 + $0x1b0] sm:$0xf]
  %v141 = vld [vmem:[%s1 + $0x1b4] sm:$0xf]
  %v142 = vld [vmem:[%s1 + $0x1b8] sm:$0xf]
  %v143 = vld [vmem:[%s1 + $0x1bc] sm:$0xf]
  %v144 = vld [vmem:[%s1 + $0x1c0] sm:$0xf]
  %v145 = vld [vmem:[%s1 + $0x1c4] sm:$0xf]
  %v146 = vld [vmem:[%s1 + $0x1c8] sm:$0xf]
  %v147 = vld [vmem:[%s1 + $0x1cc] sm:$0xf]
  %v148 = vld [vmem:[%s1 + $0x1d0] sm:$0xf]
  %v149 = vld [vmem:[%s1 + $0x1d4] sm:$0xf]
  %v150 = vld [vmem:[%s1 + $0x1d8] sm:$0xf]
  %v151 = vld [vmem:[%s1 + $0x1dc] sm:$0xf]
  %v152 = vld [vmem:[%s1 + $0x1e0] sm:$0xf]
  %v153 = vld [vmem:[%s1 + $0x1e4] sm:$0xf]
  %v154 = vld [vmem:[%s1 + $0x1e8] sm:$0xf]
  %v155 = vld [vmem:[%s1 + $0x1ec] sm:$0xf]
  %v156 = vld [vmem:[%s1 + $0x1f0] sm:$0xf]
  %v157 = vld [vmem:[%s1 + $0x1f4] sm:$0xf]
  %v158 = vld [vmem:[%s1 + $0x1f8] sm:$0xf]
  %v159 = vld [vmem:[%s1 + $0x1fc] sm:$0xf]
  %v160 = vld [vmem:[%s1 + $0x200] sm:$0xf]
  %v161 = vld [vmem:[%s1 + $0x204] sm:$0xf]
  %v162 = vld [vmem:[%s1 + $0x208] sm:$0xf]
  %v163 = vld [vmem:[%s1 + $0x20c] sm:$0xf]
  %v164 = vld [vmem:[%s1 + $0x210] sm:$0xf]
  %v165 = vld [vmem:[%s1 + $0x214] sm:$0xf]
  %v166 = vld [vmem:[%s1 + $0x218] sm:$0xf]
  %v167 = vld [vmem:[%s1 + $0x21c] sm:$0xf]
  %v168 = vld [vmem:[%s1 + $0x220] sm:$0xf]
  %v169 = vld [vmem:[%s1 + $0x224] sm:$0xf]
  %v170 = vld [vmem:[%s1 + $0x228] sm:$0xf]
  %v171 = vld [vmem:[%s1 + $0x22c] sm:$0xf]
  %v172 = vld [vmem:[%s1 + $0x230] sm:$0xf]
  %v173 = vld [vmem:[%s1 + $0x234] sm:$0xf]
  %v174 = vld [vmem:[%s1 + $0x238] sm:$0xf]
  %v175 = vld [vmem:[%s1 + $0x23c] sm:$0xf]
  %v176 = vld [vmem:[%s1 + $0x240] sm:$0xf]
  %v177 = vld [vmem:[%s1 + $0x244] sm:$0xf]
  %v178 = vld [vmem:[%s1 + $0x248] sm:$0xf]
  %v179 = vld [vmem:[%s1 + $0x24c] sm:$0xf]
  %v180 = vld [vmem:[%s1 + $0x250] sm:$0xf]
  %v181 = vld [vmem:[%s1 + $0x254] sm:$0xf]
  %v182 = vld [vmem:[%s1 + $0x258] sm:$0xf]
  %v183 = vld [vmem:[%s1 + $0x25c] sm:$0xf]
  %v184 = vld [vmem:[%s1 + $0x260] sm:$0xf]
  %v185 = vld [vmem:[%s1 + $0x264] sm:$0xf]
  %v186 = vld [vmem:[%s1 + $0x268] sm:$0xf]
  %v187 = vld [vmem:[%s1 + $0x26c] sm:$0xf]
  %v188 = vld [vmem:[%s1 + $0x270] sm:$0xf]
  %v189 = vld [vmem:[%s1 + $0x274] sm:$0xf]
  %v190 = vld [vmem:[%s1 + $0x278] sm:$0xf]
  %v191 = vld [vmem:[%s1 + $0x27c] sm:$0xf]
  %v192 = vld [vmem:[%s1 + $0x280] sm:$0xf]
  %v193 = vld [vmem:[%s1 + $0x284] sm:$0xf]
  %v194 = vld [vmem:[%s1 + $0x288] sm:$0xf]
  %v195 = vld [vmem:[%s1 + $0x28c] sm:$0xf]
  %v196 = vld [vmem:[%s1 + $0x290] sm:$0xf]
  %v197 = vld [vmem:[%s1 + $0x294] sm:$0xf]
  %v198 = vld [vmem:[%s1 + $0x298] sm:$0xf]
  %v199 = vld [vmem:[%s1 + $0x29c] sm:$0xf]
  %v200 = vld [vmem:[%s1 + $0x2a0] sm:$0xf]
  %v201 = vld [vmem:[%s1 + $0x2a4] sm:$0xf]
  %v202 = vld [vmem:[%s1 + $0x2a8] sm:$0xf]
  %v203 = vld [vmem:[%s1 + $0x2ac] sm:$0xf]
  %v204 = vld [vmem:[%s1 + $0x2b0] sm:$0xf]
  %v205 = vld [vmem:[%s1 + $0x2b4] sm:$0xf]
  %v206 = vld [vmem:[%s1 + $0x2b8] sm:$0xf]
  %v207 = vld [vmem:[%s1 + $0x2bc] sm:$0xf]
  %v208 = vld [vmem:[%s1 + $0x2c0] sm:$0xf]
  %v209 = vld [vmem:[%s1 + $0x2c4] sm:$0xf]
  %v210 = vld [vmem:[%s1 + $0x2c8] sm:$0xf]
  %v211 = vld [vmem:[%s1 + $0x2cc] sm:$0xf]
  %v212 = vld [vmem:[%s1 + $0x2d0] sm:$0xf]
  %v213 = vld [vmem:[%s1 + $0x2d4] sm:$0xf]
  %v214 = vld [vmem:[%s1 + $0x2d8] sm:$0xf]
  %v215 = vld [vmem:[%s1 + $0x2dc] sm:$0xf]
  %v216 = vld [vmem:[%s1 + $0x2e0] sm:$0xf]
  %v217 = vld [vmem:[%s1 + $0x2e4] sm:$0xf]
  %v218 = vld [vmem:[%s1 + $0x2e8] sm:$0xf]
  %v219 = vld [vmem:[%s1 + $0x2ec] sm:$0xf]
  %v220 = vld [vmem:[%s1 + $0x2f0] sm:$0xf]
  %v221 = vld [vmem:[%s1 + $0x2f4] sm:$0xf]
  %v222 = vld [vmem:[%s1 + $0x2f8] sm:$0xf]
  %v223 = vld [vmem:[%s1 + $0x2fc] sm:$0xf]
  %v224 = vld [vmem:[%s1 + $0x300] sm:$0xf]
  %v225 = vld [vmem:[%s1 + $0x304] sm:$0xf]
  %v226 = vld [vmem:[%s1 + $0x308] sm:$0xf]
  %v227 = vld [vmem:[%s1 + $0x30c] sm:$0xf]
  %v228 = vld [vmem:[%s1 + $0x310] sm:$0xf]
  %v229 = vld [vmem:[%s1 + $0x314] sm:$0xf]
  %v230 = vld [vmem:[%s1 + $0x318] sm:$0xf]
  %v231 = vld [vmem:[%s1 + $0x31c] sm:$0xf]
  %v232 = vld [vmem:[%s1 + $0x320] sm:$0xf]
  %v233 = vld [vmem:[%s1 + $0x324] sm:$0xf]
  %v234 = vld [vmem:[%s1 + $0x328] sm:$0xf]
  %v235 = vld [vmem:[%s1 + $0x32c] sm:$0xf]
  %v236 = vld [vmem:[%s1 + $0x330] sm:$0xf]
  %v237 = vld [vmem:[%s1 + $0x334] sm:$0xf]
  %v238 = vld [vmem:[%s1 + $0x338] sm:$0xf]
  %v239 = vld [vmem:[%s1 + $0x33c] sm:$0xf]
  %v240 = vld [vmem:[%s1 + $0x340] sm:$0xf]
  %v241 = vld [vmem:[%s1 + $0x344] sm:$0xf]
  %v242 = vld [vmem:[%s1 + $0x348] sm:$0xf]
  %v243 = vld [vmem:[%s1 + $0x34c] sm:$0xf]
  %v244 = vld [vmem:[%s1 + $0x350] sm:$0xf]
  %v245 = vld [vmem:[%s1 + $0x354] sm:$0xf]
  %v246 = vld [vmem:[%s1 + $0x358] sm:$0xf]
  %v247 = vld [vmem:[%s1 + $0x35c] sm:$0xf]
  %v248 = vld [vmem:[%s1 + $0x360] sm:$0xf]
  %v249 = vld [vmem:[%s1 + $0x364] sm:$0xf]
  %v250 = vld [vmem:[%s1 + $0x368] sm:$0xf]
  %v251 = vld [vmem:[%s1 + $0x36c] sm:$0xf]
  %v252 = vld [vmem:[%s1 + $0x370] sm:$0xf]
  %v253 = vld [vmem:[%s1 + $0x374] sm:$0xf]
  %v254 = vld [vmem:[%s1 + $0x378] sm:$0xf]
  %v255 = vld [vmem:[%s1 + $0x37c] sm:$0xf]
  %v256 = vld [vmem:[%s1 + $0x380] sm:$0xf]
  %v257 = vld [vmem:[%s1 + $0x384] sm:$0xf]
  %v258 = vld [vmem:[%s1 + $0x388] sm:$0xf]
  %v259 = vld [vmem:[%s1 + $0x38c] sm:$0xf]
  %v260 = vld [vmem:[%s1 + $0x390] sm:$0xf]
  %v261 = vld [vmem:[%s1 + $0x394] sm:$0xf]
  %v262 = vld [vmem:[%s1 + $0x398] sm:$0xf]
  %v263 = vld [vmem:[%s1 + $0x39c] sm:$0xf]
  %v264 = vld [vmem:[%s1 + $0x3a0] sm:$0xf]
  %v265 = vld [vmem:[%s1 + $0x3a4] sm:$0xf]
  %v266 = vld [vmem:[%s1 + $0x3a8] sm:$0xf]
  %v267 = vld [vmem:[%s1 + $0x3ac] sm:$0xf]
  %v268 = vld [vmem:[%s1 + $0x3b0] sm:$0xf]
  %v269 = vld [vmem:[%s1 + $0x3b4] sm:$0xf]
  %v270 = vld [vmem:[%s1 + $0x3b8] sm:$0xf]
  %v271 = vld [vmem:[%s1 + $0x3bc] sm:$0xf]
  %v272 = vld [vmem:[%s1 + $0x3c0] sm:$0xf]
  %v273 = vld [vmem:[%s1 + $0x3c4] sm:$0xf]
  %v274 = vld [vmem:[%s1 + $0x3c8] sm:$0xf]
  %v275 = vld [vmem:[%s1 + $0x3cc] sm:$0xf]
  %v276 = vld [vmem:[%s1 + $0x3d0] sm:$0xf]
  %v277 = vld [vmem:[%s1 + $0x3d4] sm:$0xf]
  %v278 = vld [vmem:[%s1 + $0x3d8] sm:$0xf]
  %v279 = vld [vmem:[%s1 + $0x3dc] sm:$0xf]
  %v280 = vld [vmem:[%s1 + $0x3e0] sm:$0xf]
  %v281 = vld [vmem:[%s1 + $0x3e4] sm:$0xf]
  %v282 = vld [vmem:[%s1 + $0x3e8] sm:$0xf]
  %v283 = vld [vmem:[%s1 + $0x3ec] sm:$0xf]
  %v284 = vld [vmem:[%s1 + $0x3f0] sm:$0xf]
  %v285 = vld [vmem:[%s1 + $0x3f4] sm:$0xf]
  %v286 = vld [vmem:[%s1 + $0x3f8] sm:$0xf]
  %v287 = vld [vmem:[%s1 + $0x3fc] sm:$0xf]
  %v296 = vunpack.c.l.b16 %v24
  %v297 = vunpack.c.h.b16 %v24
  %v298 = vunpack.c.l.b16 %v25
  %v299 = vunpack.c.h.b16 %v25
  %v300 = vunpack.c.l.b16 %v26
  %v301 = vunpack.c.h.b16 %v26
  %v302 = vunpack.c.l.b16 %v27
  %v303 = vunpack.c.h.b16 %v27
  %v304 = vunpack.c.l.b16 %v28
  %v305 = vunpack.c.h.b16 %v28
  %v306 = vunpack.c.l.b16 %v29
  %v307 = vunpack.c.h.b16 %v29
  %v308 = vunpack.c.l.b16 %v30
  %v309 = vunpack.c.h.b16 %v30
  %v310 = vunpack.c.l.b16 %v31
  %v311 = vunpack.c.h.b16 %v31
  %v312 = vpack.c.b16 %v296, %v296
  %v313 = vpack.c.b16 %v297, %v297
  %v314 = vpack.c.b16 %v298, %v298
  %v315 = vpack.c.b16 %v299, %v299
  %v316 = vpack.c.b16 %v300, %v300
  %v317 = vpack.c.b16 %v301, %v301
  %v318 = vpack.c.b16 %v302, %v302
  %v319 = vpack.c.b16 %v303, %v303
  %v320 = vpack.c.b16 %v304, %v304
  %v321 = vpack.c.b16 %v305, %v305
  %v322 = vpack.c.b16 %v306, %v306
  %v323 = vpack.c.b16 %v307, %v307
  %v324 = vpack.c.b16 %v308, %v308
  %v325 = vpack.c.b16 %v309, %v309
  %v326 = vpack.c.b16 %v310, %v310
  %v327 = vpack.c.b16 %v311, %v311
  %v600 = vunpack.c.l.b16 %v32
  %v601 = vunpack.c.l.b16 %v33
  %v602 = vunpack.c.l.b16 %v34
  %v603 = vunpack.c.l.b16 %v35
  %v604 = vunpack.c.l.b16 %v36
  %v605 = vunpack.c.l.b16 %v37
  %v606 = vunpack.c.l.b16 %v38
  %v607 = vunpack.c.l.b16 %v39
  %v608 = vunpack.c.l.b16 %v40
  %v609 = vunpack.c.l.b16 %v41
  %v610 = vunpack.c.l.b16 %v42
  %v611 = vunpack.c.l.b16 %v43
  %v612 = vunpack.c.l.b16 %v44
  %v613 = vunpack.c.l.b16 %v45
  %v614 = vunpack.c.l.b16 %v46
  %v615 = vunpack.c.l.b16 %v47
  %v616 = vunpack.c.l.b16 %v48
  %v617 = vunpack.c.l.b16 %v49
  %v618 = vunpack.c.l.b16 %v50
  %v619 = vunpack.c.l.b16 %v51
  %v620 = vunpack.c.l.b16 %v52
  %v621 = vunpack.c.l.b16 %v53
  %v622 = vunpack.c.l.b16 %v54
  %v623 = vunpack.c.l.b16 %v55
  %v624 = vunpack.c.l.b16 %v56
  %v625 = vunpack.c.l.b16 %v57
  %v626 = vunpack.c.l.b16 %v58
  %v627 = vunpack.c.l.b16 %v59
  %v628 = vunpack.c.l.b16 %v60
  %v629 = vunpack.c.l.b16 %v61
  %v630 = vunpack.c.l.b16 %v62
  %v631 = vunpack.c.l.b16 %v63
  %v632 = vunpack.c.l.b16 %v64
  %v633 = vunpack.c.l.b16 %v65
  %v634 = vunpack.c.l.b16 %v66
  %v635 = vunpack.c.l.b16 %v67
  %v636 = vunpack.c.l.b16 %v68
  %v637 = vunpack.c.l.b16 %v69
  %v638 = vunpack.c.l.b16 %v70
  %v639 = vunpack.c.l.b16 %v71
  %v640 = vunpack.c.l.b16 %v72
  %v641 = vunpack.c.l.b16 %v73
  %v642 = vunpack.c.l.b16 %v74
  %v643 = vunpack.c.l.b16 %v75
  %v644 = vunpack.c.l.b16 %v76
  %v645 = vunpack.c.l.b16 %v77
  %v646 = vunpack.c.l.b16 %v78
  %v647 = vunpack.c.l.b16 %v79
  %v648 = vunpack.c.l.b16 %v80
  %v649 = vunpack.c.l.b16 %v81
  %v650 = vunpack.c.l.b16 %v82
  %v651 = vunpack.c.l.b16 %v83
  %v652 = vunpack.c.l.b16 %v84
  %v653 = vunpack.c.l.b16 %v85
  %v654 = vunpack.c.l.b16 %v86
  %v655 = vunpack.c.l.b16 %v87
  %v656 = vunpack.c.l.b16 %v88
  %v657 = vunpack.c.l.b16 %v89
  %v658 = vunpack.c.l.b16 %v90
  %v659 = vunpack.c.l.b16 %v91
  %v660 = vunpack.c.l.b16 %v92
  %v661 = vunpack.c.l.b16 %v93
  %v662 = vunpack.c.l.b16 %v94
  %v663 = vunpack.c.l.b16 %v95
  %v664 = vunpack.c.l.b16 %v96
  %v665 = vunpack.c.l.b16 %v97
  %v666 = vunpack.c.l.b16 %v98
  %v667 = vunpack.c.l.b16 %v99
  %v668 = vunpack.c.l.b16 %v100
  %v669 = vunpack.c.l.b16 %v101
  %v670 = vunpack.c.l.b16 %v102
  %v671 = vunpack.c.l.b16 %v103
  %v672 = vunpack.c.l.b16 %v104
  %v673 = vunpack.c.l.b16 %v105
  %v674 = vunpack.c.l.b16 %v106
  %v675 = vunpack.c.l.b16 %v107
  %v676 = vunpack.c.l.b16 %v108
  %v677 = vunpack.c.l.b16 %v109
  %v678 = vunpack.c.l.b16 %v110
  %v679 = vunpack.c.l.b16 %v111
  %v680 = vunpack.c.l.b16 %v112
  %v681 = vunpack.c.l.b16 %v113
  %v682 = vunpack.c.l.b16 %v114
  %v683 = vunpack.c.l.b16 %v115
  %v684 = vunpack.c.l.b16 %v116
  %v685 = vunpack.c.l.b16 %v117
  %v686 = vunpack.c.l.b16 %v118
  %v687 = vunpack.c.l.b16 %v119
  %v688 = vunpack.c.l.b16 %v120
  %v689 = vunpack.c.l.b16 %v121
  %v690 = vunpack.c.l.b16 %v122
  %v691 = vunpack.c.l.b16 %v123
  %v692 = vunpack.c.l.b16 %v124
  %v693 = vunpack.c.l.b16 %v125
  %v694 = vunpack.c.l.b16 %v126
  %v695 = vunpack.c.l.b16 %v127
  %v696 = vunpack.c.l.b16 %v128
  %v697 = vunpack.c.l.b16 %v129
  %v698 = vunpack.c.l.b16 %v130
  %v699 = vunpack.c.l.b16 %v131
  %v700 = vunpack.c.l.b16 %v132
  %v701 = vunpack.c.l.b16 %v133
  %v702 = vunpack.c.l.b16 %v134
  %v703 = vunpack.c.l.b16 %v135
  %v704 = vunpack.c.l.b16 %v136
  %v705 = vunpack.c.l.b16 %v137
  %v706 = vunpack.c.l.b16 %v138
  %v707 = vunpack.c.l.b16 %v139
  %v708 = vunpack.c.l.b16 %v140
  %v709 = vunpack.c.l.b16 %v141
  %v710 = vunpack.c.l.b16 %v142
  %v711 = vunpack.c.l.b16 %v143
  %v712 = vunpack.c.l.b16 %v144
  %v713 = vunpack.c.l.b16 %v145
  %v714 = vunpack.c.l.b16 %v146
  %v715 = vunpack.c.l.b16 %v147
  %v716 = vunpack.c.l.b16 %v148
  %v717 = vunpack.c.l.b16 %v149
  %v718 = vunpack.c.l.b16 %v150
  %v719 = vunpack.c.l.b16 %v151
  %v720 = vunpack.c.l.b16 %v152
  %v721 = vunpack.c.l.b16 %v153
  %v722 = vunpack.c.l.b16 %v154
  %v723 = vunpack.c.l.b16 %v155
  %v724 = vunpack.c.l.b16 %v156
  %v725 = vunpack.c.l.b16 %v157
  %v726 = vunpack.c.l.b16 %v158
  %v727 = vunpack.c.l.b16 %v159
  %v728 = vunpack.c.l.b16 %v160
  %v729 = vunpack.c.l.b16 %v161
  %v730 = vunpack.c.l.b16 %v162
  %v731 = vunpack.c.l.b16 %v163
  %v732 = vunpack.c.l.b16 %v164
  %v733 = vunpack.c.l.b16 %v165
  %v734 = vunpack.c.l.b16 %v166
  %v735 = vunpack.c.l.b16 %v167
  %v736 = vunpack.c.l.b16 %v168
  %v737 = vunpack.c.l.b16 %v169
  %v738 = vunpack.c.l.b16 %v170
  %v739 = vunpack.c.l.b16 %v171
  %v740 = vunpack.c.l.b16 %v172
  %v741 = vunpack.c.l.b16 %v173
  %v742 = vunpack.c.l.b16 %v174
  %v743 = vunpack.c.l.b16 %v175
  %v744 = vunpack.c.l.b16 %v176
  %v745 = vunpack.c.l.b16 %v177
  %v746 = vunpack.c.l.b16 %v178
  %v747 = vunpack.c.l.b16 %v179
  %v748 = vunpack.c.l.b16 %v180
  %v749 = vunpack.c.l.b16 %v181
  %v750 = vunpack.c.l.b16 %v182
  %v751 = vunpack.c.l.b16 %v183
  %v752 = vunpack.c.l.b16 %v184
  %v753 = vunpack.c.l.b16 %v185
  %v754 = vunpack.c.l.b16 %v186
  %v755 = vunpack.c.l.b16 %v187
  %v756 = vunpack.c.l.b16 %v188
  %v757 = vunpack.c.l.b16 %v189
  %v758 = vunpack.c.l.b16 %v190
  %v759 = vunpack.c.l.b16 %v191
  %v760 = vunpack.c.l.b16 %v192
  %v761 = vunpack.c.l.b16 %v193
  %v762 = vunpack.c.l.b16 %v194
  %v763 = vunpack.c.l.b16 %v195
  %v764 = vunpack.c.l.b16 %v196
  %v765 = vunpack.c.l.b16 %v197
  %v766 = vunpack.c.l.b16 %v198
  %v767 = vunpack.c.l.b16 %v199
  %v768 = vunpack.c.l.b16 %v200
  %v769 = vunpack.c.l.b16 %v201
  %v770 = vunpack.c.l.b16 %v202
  %v771 = vunpack.c.l.b16 %v203
  %v772 = vunpack.c.l.b16 %v204
  %v773 = vunpack.c.l.b16 %v205
  %v774 = vunpack.c.l.b16 %v206
  %v775 = vunpack.c.l.b16 %v207
  %v776 = vunpack.c.l.b16 %v208
  %v777 = vunpack.c.l.b16 %v209
  %v778 = vunpack.c.l.b16 %v210
  %v779 = vunpack.c.l.b16 %v211
  %v780 = vunpack.c.l.b16 %v212
  %v781 = vunpack.c.l.b16 %v213
  %v782 = vunpack.c.l.b16 %v214
  %v783 = vunpack.c.l.b16 %v215
  %v784 = vunpack.c.l.b16 %v216
  %v785 = vunpack.c.l.b16 %v217
  %v786 = vunpack.c.l.b16 %v218
  %v787 = vunpack.c.l.b16 %v219
  %v788 = vunpack.c.l.b16 %v220
  %v789 = vunpack.c.l.b16 %v221
  %v790 = vunpack.c.l.b16 %v222
  %v791 = vunpack.c.l.b16 %v223
  %v792 = vunpack.c.l.b16 %v224
  %v793 = vunpack.c.l.b16 %v225
  %v794 = vunpack.c.l.b16 %v226
  %v795 = vunpack.c.l.b16 %v227
  %v796 = vunpack.c.l.b16 %v228
  %v797 = vunpack.c.l.b16 %v229
  %v798 = vunpack.c.l.b16 %v230
  %v799 = vunpack.c.l.b16 %v231
  %v800 = vunpack.c.l.b16 %v232
  %v801 = vunpack.c.l.b16 %v233
  %v802 = vunpack.c.l.b16 %v234
  %v803 = vunpack.c.l.b16 %v235
  %v804 = vunpack.c.l.b16 %v236
  %v805 = vunpack.c.l.b16 %v237
  %v806 = vunpack.c.l.b16 %v238
  %v807 = vunpack.c.l.b16 %v239
  %v808 = vunpack.c.l.b16 %v240
  %v809 = vunpack.c.l.b16 %v241
  %v810 = vunpack.c.l.b16 %v242
  %v811 = vunpack.c.l.b16 %v243
  %v812 = vunpack.c.l.b16 %v244
  %v813 = vunpack.c.l.b16 %v245
  %v814 = vunpack.c.l.b16 %v246
  %v815 = vunpack.c.l.b16 %v247
  %v816 = vunpack.c.l.b16 %v248
  %v817 = vunpack.c.l.b16 %v249
  %v818 = vunpack.c.l.b16 %v250
  %v819 = vunpack.c.l.b16 %v251
  %v820 = vunpack.c.l.b16 %v252
  %v821 = vunpack.c.l.b16 %v253
  %v822 = vunpack.c.l.b16 %v254
  %v823 = vunpack.c.l.b16 %v255
  %v824 = vunpack.c.l.b16 %v256
  %v825 = vunpack.c.l.b16 %v257
  %v826 = vunpack.c.l.b16 %v258
  %v827 = vunpack.c.l.b16 %v259
  %v828 = vunpack.c.l.b16 %v260
  %v829 = vunpack.c.l.b16 %v261
  %v830 = vunpack.c.l.b16 %v262
  %v831 = vunpack.c.l.b16 %v263
  %v832 = vunpack.c.l.b16 %v264
  %v833 = vunpack.c.l.b16 %v265
  %v834 = vunpack.c.l.b16 %v266
  %v835 = vunpack.c.l.b16 %v267
  %v836 = vunpack.c.l.b16 %v268
  %v837 = vunpack.c.l.b16 %v269
  %v838 = vunpack.c.l.b16 %v270
  %v839 = vunpack.c.l.b16 %v271
  %v840 = vunpack.c.l.b16 %v272
  %v841 = vunpack.c.l.b16 %v273
  %v842 = vunpack.c.l.b16 %v274
  %v843 = vunpack.c.l.b16 %v275
  %v844 = vunpack.c.l.b16 %v276
  %v845 = vunpack.c.l.b16 %v277
  %v846 = vunpack.c.l.b16 %v278
  %v847 = vunpack.c.l.b16 %v279
  %v848 = vunpack.c.l.b16 %v280
  %v849 = vunpack.c.l.b16 %v281
  %v850 = vunpack.c.l.b16 %v282
  %v851 = vunpack.c.l.b16 %v283
  %v852 = vunpack.c.l.b16 %v284
  %v853 = vunpack.c.l.b16 %v285
  %v854 = vunpack.c.l.b16 %v286
  %v855 = vunpack.c.l.b16 %v287
  %v856 = vpack.c.b16 %v601, %v600
  %v857 = vpack.c.b16 %v603, %v602
  %v858 = vpack.c.b16 %v605, %v604
  %v859 = vpack.c.b16 %v607, %v606
  %v860 = vpack.c.b16 %v609, %v608
  %v861 = vpack.c.b16 %v611, %v610
  %v862 = vpack.c.b16 %v613, %v612
  %v863 = vpack.c.b16 %v615, %v614
  %v864 = vpack.c.b16 %v617, %v616
  %v865 = vpack.c.b16 %v619, %v618
  %v866 = vpack.c.b16 %v621, %v620
  %v867 = vpack.c.b16 %v623, %v622
  %v868 = vpack.c.b16 %v625, %v624
  %v869 = vpack.c.b16 %v627, %v626
  %v870 = vpack.c.b16 %v629, %v628
  %v871 = vpack.c.b16 %v631, %v630
  %v872 = vpack.c.b16 %v633, %v632
  %v873 = vpack.c.b16 %v635, %v634
  %v874 = vpack.c.b16 %v637, %v636
  %v875 = vpack.c.b16 %v639, %v638
  %v876 = vpack.c.b16 %v641, %v640
  %v877 = vpack.c.b16 %v643, %v642
  %v878 = vpack.c.b16 %v645, %v644
  %v879 = vpack.c.b16 %v647, %v646
  %v880 = vpack.c.b16 %v649, %v648
  %v881 = vpack.c.b16 %v651, %v650
  %v882 = vpack.c.b16 %v653, %v652
  %v883 = vpack.c.b16 %v655, %v654
  %v884 = vpack.c.b16 %v657, %v656
  %v885 = vpack.c.b16 %v659, %v658
  %v886 = vpack.c.b16 %v661, %v660
  %v887 = vpack.c.b16 %v663, %v662
  %v888 = vpack.c.b16 %v665, %v664
  %v889 = vpack.c.b16 %v667, %v666
  %v890 = vpack.c.b16 %v669, %v668
  %v891 = vpack.c.b16 %v671, %v670
  %v892 = vpack.c.b16 %v673, %v672
  %v893 = vpack.c.b16 %v675, %v674
  %v894 = vpack.c.b16 %v677, %v676
  %v895 = vpack.c.b16 %v679, %v678
  %v896 = vpack.c.b16 %v681, %v680
  %v897 = vpack.c.b16 %v683, %v682
  %v898 = vpack.c.b16 %v685, %v684
  %v899 = vpack.c.b16 %v687, %v686
  %v900 = vpack.c.b16 %v689, %v688
  %v901 = vpack.c.b16 %v691, %v690
  %v902 = vpack.c.b16 %v693, %v692
  %v903 = vpack.c.b16 %v695, %v694
  %v904 = vpack.c.b16 %v697, %v696
  %v905 = vpack.c.b16 %v699, %v698
  %v906 = vpack.c.b16 %v701, %v700
  %v907 = vpack.c.b16 %v703, %v702
  %v908 = vpack.c.b16 %v705, %v704
  %v909 = vpack.c.b16 %v707, %v706
  %v910 = vpack.c.b16 %v709, %v708
  %v911 = vpack.c.b16 %v711, %v710
  %v912 = vpack.c.b16 %v713, %v712
  %v913 = vpack.c.b16 %v715, %v714
  %v914 = vpack.c.b16 %v717, %v716
  %v915 = vpack.c.b16 %v719, %v718
  %v916 = vpack.c.b16 %v721, %v720
  %v917 = vpack.c.b16 %v723, %v722
  %v918 = vpack.c.b16 %v725, %v724
  %v919 = vpack.c.b16 %v727, %v726
  %v920 = vpack.c.b16 %v729, %v728
  %v921 = vpack.c.b16 %v731, %v730
  %v922 = vpack.c.b16 %v733, %v732
  %v923 = vpack.c.b16 %v735, %v734
  %v924 = vpack.c.b16 %v737, %v736
  %v925 = vpack.c.b16 %v739, %v738
  %v926 = vpack.c.b16 %v741, %v740
  %v927 = vpack.c.b16 %v743, %v742
  %v928 = vpack.c.b16 %v745, %v744
  %v929 = vpack.c.b16 %v747, %v746
  %v930 = vpack.c.b16 %v749, %v748
  %v931 = vpack.c.b16 %v751, %v750
  %v932 = vpack.c.b16 %v753, %v752
  %v933 = vpack.c.b16 %v755, %v754
  %v934 = vpack.c.b16 %v757, %v756
  %v935 = vpack.c.b16 %v759, %v758
  %v936 = vpack.c.b16 %v761, %v760
  %v937 = vpack.c.b16 %v763, %v762
  %v938 = vpack.c.b16 %v765, %v764
  %v939 = vpack.c.b16 %v767, %v766
  %v940 = vpack.c.b16 %v769, %v768
  %v941 = vpack.c.b16 %v771, %v770
  %v942 = vpack.c.b16 %v773, %v772
  %v943 = vpack.c.b16 %v775, %v774
  %v944 = vpack.c.b16 %v777, %v776
  %v945 = vpack.c.b16 %v779, %v778
  %v946 = vpack.c.b16 %v781, %v780
  %v947 = vpack.c.b16 %v783, %v782
  %v948 = vpack.c.b16 %v785, %v784
  %v949 = vpack.c.b16 %v787, %v786
  %v950 = vpack.c.b16 %v789, %v788
  %v951 = vpack.c.b16 %v791, %v790
  %v952 = vpack.c.b16 %v793, %v792
  %v953 = vpack.c.b16 %v795, %v794
  %v954 = vpack.c.b16 %v797, %v796
  %v955 = vpack.c.b16 %v799, %v798
  %v956 = vpack.c.b16 %v801, %v800
  %v957 = vpack.c.b16 %v803, %v802
  %v958 = vpack.c.b16 %v805, %v804
  %v959 = vpack.c.b16 %v807, %v806
  %v960 = vpack.c.b16 %v809, %v808
  %v961 = vpack.c.b16 %v811, %v810
  %v962 = vpack.c.b16 %v813, %v812
  %v963 = vpack.c.b16 %v815, %v814
  %v964 = vpack.c.b16 %v817, %v816
  %v965 = vpack.c.b16 %v819, %v818
  %v966 = vpack.c.b16 %v821, %v820
  %v967 = vpack.c.b16 %v823, %v822
  %v968 = vpack.c.b16 %v825, %v824
  %v969 = vpack.c.b16 %v827, %v826
  %v970 = vpack.c.b16 %v829, %v828
  %v971 = vpack.c.b16 %v831, %v830
  %v972 = vpack.c.b16 %v833, %v832
  %v973 = vpack.c.b16 %v835, %v834
  %v974 = vpack.c.b16 %v837, %v836
  %v975 = vpack.c.b16 %v839, %v838
  %v976 = vpack.c.b16 %v841, %v840
  %v977 = vpack.c.b16 %v843, %v842
  %v978 = vpack.c.b16 %v845, %v844
  %v979 = vpack.c.b16 %v847, %v846
  %v980 = vpack.c.b16 %v849, %v848
  %v981 = vpack.c.b16 %v851, %v850
  %v982 = vpack.c.b16 %v853, %v852
  %v983 = vpack.c.b16 %v855, %v854
  %1112 = vmatprep.subr.bf16.mxu0 0
  %1113 = vmatpush1.bf16.msra.mxu0 %v856
  %1114 = vmatprep.subr.bf16.mxu0 0
  %1115 = vmatpush1.bf16.msra.mxu0 %v857
  %1116 = vmatprep.subr.bf16.mxu0 0
  %1117 = vmatpush1.bf16.msra.mxu0 %v858
  %1118 = vmatprep.subr.bf16.mxu0 0
  %1119 = vmatpush1.bf16.msra.mxu0 %v859
  %1120 = vmatprep.subr.bf16.mxu0 0
  %1121 = vmatpush1.bf16.msra.mxu0 %v860
  %1122 = vmatprep.subr.bf16.mxu0 0
  %1123 = vmatpush1.bf16.msra.mxu0 %v861
  %1124 = vmatprep.subr.bf16.mxu0 0
  %1125 = vmatpush1.bf16.msra.mxu0 %v862
  %1126 = vmatprep.subr.bf16.mxu0 0
  %1127 = vmatpush1.bf16.msra.mxu0 %v863
  %1128 = vmatprep.subr.bf16.mxu0 0
  %1129 = vmatpush1.bf16.msra.mxu0 %v864
  %1130 = vmatprep.subr.bf16.mxu0 0
  %1131 = vmatpush1.bf16.msra.mxu0 %v865
  %1132 = vmatprep.subr.bf16.mxu0 0
  %1133 = vmatpush1.bf16.msra.mxu0 %v866
  %1134 = vmatprep.subr.bf16.mxu0 0
  %1135 = vmatpush1.bf16.msra.mxu0 %v867
  %1136 = vmatprep.subr.bf16.mxu0 0
  %1137 = vmatpush1.bf16.msra.mxu0 %v868
  %1138 = vmatprep.subr.bf16.mxu0 0
  %1139 = vmatpush1.bf16.msra.mxu0 %v869
  %1140 = vmatprep.subr.bf16.mxu0 0
  %1141 = vmatpush1.bf16.msra.mxu0 %v870
  %1142 = vmatprep.subr.bf16.mxu0 0
  %1143 = vmatpush1.bf16.msra.mxu0 %v871
  %1144 = vmatprep.mubr.bf16.mxu0 %v313
  %1145 = vmatmul.mubr.bf16.gmra.mrb[0].mxu0 %v312
  %v1146 = vpop.f32.mrb[0].mxu0
  %v1147 = vadd.f32 0.0, %v1146
  %v1148 = vpop.f32.mrb[0].mxu0
  %v1149 = vpop.f32.mrb[0].mxu0
  %v1150 = vpop.f32.mrb[0].mxu0
  %1151 = vdwg.mxu0
  %1152 = vmatprep.subr.bf16.mxu0 0
  %1153 = vmatpush1.bf16.msra.mxu0 %v872
  %1154 = vmatprep.subr.bf16.mxu0 0
  %1155 = vmatpush1.bf16.msra.mxu0 %v873
  %1156 = vmatprep.subr.bf16.mxu0 0
  %1157 = vmatpush1.bf16.msra.mxu0 %v874
  %1158 = vmatprep.subr.bf16.mxu0 0
  %1159 = vmatpush1.bf16.msra.mxu0 %v875
  %1160 = vmatprep.subr.bf16.mxu0 0
  %1161 = vmatpush1.bf16.msra.mxu0 %v876
  %1162 = vmatprep.subr.bf16.mxu0 0
  %1163 = vmatpush1.bf16.msra.mxu0 %v877
  %1164 = vmatprep.subr.bf16.mxu0 0
  %1165 = vmatpush1.bf16.msra.mxu0 %v878
  %1166 = vmatprep.subr.bf16.mxu0 0
  %1167 = vmatpush1.bf16.msra.mxu0 %v879
  %1168 = vmatprep.subr.bf16.mxu0 0
  %1169 = vmatpush1.bf16.msra.mxu0 %v880
  %1170 = vmatprep.subr.bf16.mxu0 0
  %1171 = vmatpush1.bf16.msra.mxu0 %v881
  %1172 = vmatprep.subr.bf16.mxu0 0
  %1173 = vmatpush1.bf16.msra.mxu0 %v882
  %1174 = vmatprep.subr.bf16.mxu0 0
  %1175 = vmatpush1.bf16.msra.mxu0 %v883
  %1176 = vmatprep.subr.bf16.mxu0 0
  %1177 = vmatpush1.bf16.msra.mxu0 %v884
  %1178 = vmatprep.subr.bf16.mxu0 0
  %1179 = vmatpush1.bf16.msra.mxu0 %v885
  %1180 = vmatprep.subr.bf16.mxu0 0
  %1181 = vmatpush1.bf16.msra.mxu0 %v886
  %1182 = vmatprep.subr.bf16.mxu0 0
  %1183 = vmatpush1.bf16.msra.mxu0 %v887
  %1184 = vmatprep.mubr.bf16.mxu0 %v315
  %1185 = vmatmul.mubr.bf16.gmra.mrb[0].mxu0 %v314
  %v1186 = vpop.f32.mrb[0].mxu0
  %v1187 = vadd.f32 %v1147, %v1186
  %v1188 = vpop.f32.mrb[0].mxu0
  %v1189 = vpop.f32.mrb[0].mxu0
  %v1190 = vpop.f32.mrb[0].mxu0
  %1191 = vdwg.mxu0
  %1192 = vmatprep.subr.bf16.mxu0 0
  %1193 = vmatpush1.bf16.msra.mxu0 %v888
  %1194 = vmatprep.subr.bf16.mxu0 0
  %1195 = vmatpush1.bf16.msra.mxu0 %v889
  %1196 = vmatprep.subr.bf16.mxu0 0
  %1197 = vmatpush1.bf16.msra.mxu0 %v890
  %1198 = vmatprep.subr.bf16.mxu0 0
  %1199 = vmatpush1.bf16.msra.mxu0 %v891
  %1200 = vmatprep.subr.bf16.mxu0 0
  %1201 = vmatpush1.bf16.msra.mxu0 %v892
  %1202 = vmatprep.subr.bf16.mxu0 0
  %1203 = vmatpush1.bf16.msra.mxu0 %v893
  %1204 = vmatprep.subr.bf16.mxu0 0
  %1205 = vmatpush1.bf16.msra.mxu0 %v894
  %1206 = vmatprep.subr.bf16.mxu0 0
  %1207 = vmatpush1.bf16.msra.mxu0 %v895
  %1208 = vmatprep.subr.bf16.mxu0 0
  %1209 = vmatpush1.bf16.msra.mxu0 %v896
  %1210 = vmatprep.subr.bf16.mxu0 0
  %1211 = vmatpush1.bf16.msra.mxu0 %v897
  %1212 = vmatprep.subr.bf16.mxu0 0
  %1213 = vmatpush1.bf16.msra.mxu0 %v898
  %1214 = vmatprep.subr.bf16.mxu0 0
  %1215 = vmatpush1.bf16.msra.mxu0 %v899
  %1216 = vmatprep.subr.bf16.mxu0 0
  %1217 = vmatpush1.bf16.msra.mxu0 %v900
  %1218 = vmatprep.subr.bf16.mxu0 0
  %1219 = vmatpush1.bf16.msra.mxu0 %v901
  %1220 = vmatprep.subr.bf16.mxu0 0
  %1221 = vmatpush1.bf16.msra.mxu0 %v902
  %1222 = vmatprep.subr.bf16.mxu0 0
  %1223 = vmatpush1.bf16.msra.mxu0 %v903
  %1224 = vmatprep.mubr.bf16.mxu0 %v317
  %1225 = vmatmul.mubr.bf16.gmra.mrb[0].mxu0 %v316
  %v1226 = vpop.f32.mrb[0].mxu0
  %v1227 = vadd.f32 %v1187, %v1226
  %v1228 = vpop.f32.mrb[0].mxu0
  %v1229 = vpop.f32.mrb[0].mxu0
  %v1230 = vpop.f32.mrb[0].mxu0
  %1231 = vdwg.mxu0
  %1232 = vmatprep.subr.bf16.mxu0 0
  %1233 = vmatpush1.bf16.msra.mxu0 %v904
  %1234 = vmatprep.subr.bf16.mxu0 0
  %1235 = vmatpush1.bf16.msra.mxu0 %v905
  %1236 = vmatprep.subr.bf16.mxu0 0
  %1237 = vmatpush1.bf16.msra.mxu0 %v906
  %1238 = vmatprep.subr.bf16.mxu0 0
  %1239 = vmatpush1.bf16.msra.mxu0 %v907
  %1240 = vmatprep.subr.bf16.mxu0 0
  %1241 = vmatpush1.bf16.msra.mxu0 %v908
  %1242 = vmatprep.subr.bf16.mxu0 0
  %1243 = vmatpush1.bf16.msra.mxu0 %v909
  %1244 = vmatprep.subr.bf16.mxu0 0
  %1245 = vmatpush1.bf16.msra.mxu0 %v910
  %1246 = vmatprep.subr.bf16.mxu0 0
  %1247 = vmatpush1.bf16.msra.mxu0 %v911
  %1248 = vmatprep.subr.bf16.mxu0 0
  %1249 = vmatpush1.bf16.msra.mxu0 %v912
  %1250 = vmatprep.subr.bf16.mxu0 0
  %1251 = vmatpush1.bf16.msra.mxu0 %v913
  %1252 = vmatprep.subr.bf16.mxu0 0
  %1253 = vmatpush1.bf16.msra.mxu0 %v914
  %1254 = vmatprep.subr.bf16.mxu0 0
  %1255 = vmatpush1.bf16.msra.mxu0 %v915
  %1256 = vmatprep.subr.bf16.mxu0 0
  %1257 = vmatpush1.bf16.msra.mxu0 %v916
  %1258 = vmatprep.subr.bf16.mxu0 0
  %1259 = vmatpush1.bf16.msra.mxu0 %v917
  %1260 = vmatprep.subr.bf16.mxu0 0
  %1261 = vmatpush1.bf16.msra.mxu0 %v918
  %1262 = vmatprep.subr.bf16.mxu0 0
  %1263 = vmatpush1.bf16.msra.mxu0 %v919
  %1264 = vmatprep.mubr.bf16.mxu0 %v319
  %1265 = vmatmul.mubr.bf16.gmra.mrb[0].mxu0 %v318
  %v1266 = vpop.f32.mrb[0].mxu0
  %v1267 = vadd.f32 %v1227, %v1266
  %v1268 = vpop.f32.mrb[0].mxu0
  %v1269 = vpop.f32.mrb[0].mxu0
  %v1270 = vpop.f32.mrb[0].mxu0
  %1271 = vdwg.mxu0
  %1272 = vmatprep.subr.bf16.mxu0 0
  %1273 = vmatpush1.bf16.msra.mxu0 %v920
  %1274 = vmatprep.subr.bf16.mxu0 0
  %1275 = vmatpush1.bf16.msra.mxu0 %v921
  %1276 = vmatprep.subr.bf16.mxu0 0
  %1277 = vmatpush1.bf16.msra.mxu0 %v922
  %1278 = vmatprep.subr.bf16.mxu0 0
  %1279 = vmatpush1.bf16.msra.mxu0 %v923
  %1280 = vmatprep.subr.bf16.mxu0 0
  %1281 = vmatpush1.bf16.msra.mxu0 %v924
  %1282 = vmatprep.subr.bf16.mxu0 0
  %1283 = vmatpush1.bf16.msra.mxu0 %v925
  %1284 = vmatprep.subr.bf16.mxu0 0
  %1285 = vmatpush1.bf16.msra.mxu0 %v926
  %1286 = vmatprep.subr.bf16.mxu0 0
  %1287 = vmatpush1.bf16.msra.mxu0 %v927
  %1288 = vmatprep.subr.bf16.mxu0 0
  %1289 = vmatpush1.bf16.msra.mxu0 %v928
  %1290 = vmatprep.subr.bf16.mxu0 0
  %1291 = vmatpush1.bf16.msra.mxu0 %v929
  %1292 = vmatprep.subr.bf16.mxu0 0
  %1293 = vmatpush1.bf16.msra.mxu0 %v930
  %1294 = vmatprep.subr.bf16.mxu0 0
  %1295 = vmatpush1.bf16.msra.mxu0 %v931
  %1296 = vmatprep.subr.bf16.mxu0 0
  %1297 = vmatpush1.bf16.msra.mxu0 %v932
  %1298 = vmatprep.subr.bf16.mxu0 0
  %1299 = vmatpush1.bf16.msra.mxu0 %v933
  %1300 = vmatprep.subr.bf16.mxu0 0
  %1301 = vmatpush1.bf16.msra.mxu0 %v934
  %1302 = vmatprep.subr.bf16.mxu0 0
  %1303 = vmatpush1.bf16.msra.mxu0 %v935
  %1304 = vmatprep.mubr.bf16.mxu0 %v321
  %1305 = vmatmul.mubr.bf16.gmra.mrb[0].mxu0 %v320
  %v1306 = vpop.f32.mrb[0].mxu0
  %v1307 = vadd.f32 %v1267, %v1306
  %v1308 = vpop.f32.mrb[0].mxu0
  %v1309 = vpop.f32.mrb[0].mxu0
  %v1310 = vpop.f32.mrb[0].mxu0
  %1311 = vdwg.mxu0
  %1312 = vmatprep.subr.bf16.mxu0 0
  %1313 = vmatpush1.bf16.msra.mxu0 %v936
  %1314 = vmatprep.subr.bf16.mxu0 0
  %1315 = vmatpush1.bf16.msra.mxu0 %v937
  %1316 = vmatprep.subr.bf16.mxu0 0
  %1317 = vmatpush1.bf16.msra.mxu0 %v938
  %1318 = vmatprep.subr.bf16.mxu0 0
  %1319 = vmatpush1.bf16.msra.mxu0 %v939
  %1320 = vmatprep.subr.bf16.mxu0 0
  %1321 = vmatpush1.bf16.msra.mxu0 %v940
  %1322 = vmatprep.subr.bf16.mxu0 0
  %1323 = vmatpush1.bf16.msra.mxu0 %v941
  %1324 = vmatprep.subr.bf16.mxu0 0
  %1325 = vmatpush1.bf16.msra.mxu0 %v942
  %1326 = vmatprep.subr.bf16.mxu0 0
  %1327 = vmatpush1.bf16.msra.mxu0 %v943
  %1328 = vmatprep.subr.bf16.mxu0 0
  %1329 = vmatpush1.bf16.msra.mxu0 %v944
  %1330 = vmatprep.subr.bf16.mxu0 0
  %1331 = vmatpush1.bf16.msra.mxu0 %v945
  %1332 = vmatprep.subr.bf16.mxu0 0
  %1333 = vmatpush1.bf16.msra.mxu0 %v946
  %1334 = vmatprep.subr.bf16.mxu0 0
  %1335 = vmatpush1.bf16.msra.mxu0 %v947
  %1336 = vmatprep.subr.bf16.mxu0 0
  %1337 = vmatpush1.bf16.msra.mxu0 %v948
  %1338 = vmatprep.subr.bf16.mxu0 0
  %1339 = vmatpush1.bf16.msra.mxu0 %v949
  %1340 = vmatprep.subr.bf16.mxu0 0
  %1341 = vmatpush1.bf16.msra.mxu0 %v950
  %1342 = vmatprep.subr.bf16.mxu0 0
  %1343 = vmatpush1.bf16.msra.mxu0 %v951
  %1344 = vmatprep.mubr.bf16.mxu0 %v323
  %1345 = vmatmul.mubr.bf16.gmra.mrb[0].mxu0 %v322
  %v1346 = vpop.f32.mrb[0].mxu0
  %v1347 = vadd.f32 %v1307, %v1346
  %v1348 = vpop.f32.mrb[0].mxu0
  %v1349 = vpop.f32.mrb[0].mxu0
  %v1350 = vpop.f32.mrb[0].mxu0
  %1351 = vdwg.mxu0
  %1352 = vmatprep.subr.bf16.mxu0 0
  %1353 = vmatpush1.bf16.msra.mxu0 %v952
  %1354 = vmatprep.subr.bf16.mxu0 0
  %1355 = vmatpush1.bf16.msra.mxu0 %v953
  %1356 = vmatprep.subr.bf16.mxu0 0
  %1357 = vmatpush1.bf16.msra.mxu0 %v954
  %1358 = vmatprep.subr.bf16.mxu0 0
  %1359 = vmatpush1.bf16.msra.mxu0 %v955
  %1360 = vmatprep.subr.bf16.mxu0 0
  %1361 = vmatpush1.bf16.msra.mxu0 %v956
  %1362 = vmatprep.subr.bf16.mxu0 0
  %1363 = vmatpush1.bf16.msra.mxu0 %v957
  %1364 = vmatprep.subr.bf16.mxu0 0
  %1365 = vmatpush1.bf16.msra.mxu0 %v958
  %1366 = vmatprep.subr.bf16.mxu0 0
  %1367 = vmatpush1.bf16.msra.mxu0 %v959
  %1368 = vmatprep.subr.bf16.mxu0 0
  %1369 = vmatpush1.bf16.msra.mxu0 %v960
  %1370 = vmatprep.subr.bf16.mxu0 0
  %1371 = vmatpush1.bf16.msra.mxu0 %v961
  %1372 = vmatprep.subr.bf16.mxu0 0
  %1373 = vmatpush1.bf16.msra.mxu0 %v962
  %1374 = vmatprep.subr.bf16.mxu0 0
  %1375 = vmatpush1.bf16.msra.mxu0 %v963
  %1376 = vmatprep.subr.bf16.mxu0 0
  %1377 = vmatpush1.bf16.msra.mxu0 %v964
  %1378 = vmatprep.subr.bf16.mxu0 0
  %1379 = vmatpush1.bf16.msra.mxu0 %v965
  %1380 = vmatprep.subr.bf16.mxu0 0
  %1381 = vmatpush1.bf16.msra.mxu0 %v966
  %1382 = vmatprep.subr.bf16.mxu0 0
  %1383 = vmatpush1.bf16.msra.mxu0 %v967
  %1384 = vmatprep.mubr.bf16.mxu0 %v325
  %1385 = vmatmul.mubr.bf16.gmra.mrb[0].mxu0 %v324
  %v1386 = vpop.f32.mrb[0].mxu0
  %v1387 = vadd.f32 %v1347, %v1386
  %v1388 = vpop.f32.mrb[0].mxu0
  %v1389 = vpop.f32.mrb[0].mxu0
  %v1390 = vpop.f32.mrb[0].mxu0
  %1391 = vdwg.mxu0
  %1392 = vmatprep.subr.bf16.mxu0 0
  %1393 = vmatpush1.bf16.msra.mxu0 %v968
  %1394 = vmatprep.subr.bf16.mxu0 0
  %1395 = vmatpush1.bf16.msra.mxu0 %v969
  %1396 = vmatprep.subr.bf16.mxu0 0
  %1397 = vmatpush1.bf16.msra.mxu0 %v970
  %1398 = vmatprep.subr.bf16.mxu0 0
  %1399 = vmatpush1.bf16.msra.mxu0 %v971
  %1400 = vmatprep.subr.bf16.mxu0 0
  %1401 = vmatpush1.bf16.msra.mxu0 %v972
  %1402 = vmatprep.subr.bf16.mxu0 0
  %1403 = vmatpush1.bf16.msra.mxu0 %v973
  %1404 = vmatprep.subr.bf16.mxu0 0
  %1405 = vmatpush1.bf16.msra.mxu0 %v974
  %1406 = vmatprep.subr.bf16.mxu0 0
  %1407 = vmatpush1.bf16.msra.mxu0 %v975
  %1408 = vmatprep.subr.bf16.mxu0 0
  %1409 = vmatpush1.bf16.msra.mxu0 %v976
  %1410 = vmatprep.subr.bf16.mxu0 0
  %1411 = vmatpush1.bf16.msra.mxu0 %v977
  %1412 = vmatprep.subr.bf16.mxu0 0
  %1413 = vmatpush1.bf16.msra.mxu0 %v978
  %1414 = vmatprep.subr.bf16.mxu0 0
  %1415 = vmatpush1.bf16.msra.mxu0 %v979
  %1416 = vmatprep.subr.bf16.mxu0 0
  %1417 = vmatpush1.bf16.msra.mxu0 %v980
  %1418 = vmatprep.subr.bf16.mxu0 0
  %1419 = vmatpush1.bf16.msra.mxu0 %v981
  %1420 = vmatprep.subr.bf16.mxu0 0
  %1421 = vmatpush1.bf16.msra.mxu0 %v982
  %1422 = vmatprep.subr.bf16.mxu0 0
  %1423 = vmatpush1.bf16.msra.mxu0 %v983
  %1424 = vmatprep.mubr.bf16.mxu0 %v327
  %1425 = vmatmul.mubr.bf16.gmra.mrb[0].mxu0 %v326
  %v1426 = vpop.f32.mrb[0].mxu0
  %v1427 = vadd.f32 %v1387, %v1426
  %v1428 = vpop.f32.mrb[0].mxu0
  %v1429 = vpop.f32.mrb[0].mxu0
  %v1430 = vpop.f32.mrb[0].mxu0
  %1431 = vdwg.mxu0
  %v1432 = vlaneseq
  %v1433 = vshrl.u32 %v1432, 7
  %vm1434 = vcmp.lt.s32.totalorder %v1433, 2
  %v1435 = vsel %vm1434, 1, 0
  %v1436 = vcvt.s32.f32 %v1435
  %v1437 = vmul.f32 %v1427, %v1436
  %v1438 = vrot.slane %v1437, 4
  %v1439 = vadd.f32 %v1437, %v1438
  %v1440 = vrot.slane %v1439, 2
  %v1441 = vadd.f32 %v1439, %v1440
  %v1442 = vrot.slane %v1441, 1
  %v1443 = vadd.f32 %v1441, %v1442
  %v1444 = vmul.f32 %v1443, 0.5
  %v1445 = vmul.f32 %v1427, %v1427
  %v1446 = vmul.f32 %v1445, %v1436
  %v1447 = vrot.slane %v1446, 4
  %v1448 = vadd.f32 %v1446, %v1447
  %v1449 = vrot.slane %v1448, 2
  %v1450 = vadd.f32 %v1448, %v1449
  %v1451 = vrot.slane %v1450, 1
  %v1452 = vadd.f32 %v1450, %v1451
  %v1453 = vmul.f32 %v1452, 0.5
  %v1454 = vmul.f32 %v1444, %v1444
  %v1455 = vsub.f32 %v1453, %v1454
  %v1456 = vmax.f32 %v1455, 0.0
  %v1457 = vsub.f32 %v1427, %v1444
  %v1458 = vadd.f32 %v1456, 1e-05
  %v1459 = vrsqrt.pop %v1458
  %v1460 = vmul.f32 %v1457, %v1459
  %v1461 = vld [vmem:[%s2] sm:$0x1]
  %v1463 = vlaneseq
  %v1464 = vshrl.u32 %v1463, 7
  %v1465 = vsub.s32 0, %v1464
  %v1466 = vrot.slane %v1461, %v1465
  %v1468 = vmul.f32 %v1460, %v1466
  %v1469 = vld [vmem:[%s3] sm:$0x1]
  %v1471 = vlaneseq
  %v1472 = vshrl.u32 %v1471, 7
  %v1473 = vsub.s32 0, %v1472
  %v1474 = vrot.slane %v1469, %v1473
  %v1476 = vadd.f32 %v1468, %v1474
  %v1477 = vld [vmem:[%s4] sm:$0xff]
  %v1478 = vld [vmem:[%s4 + $0x8] sm:$0xff]
  %v1479 = vld [vmem:[%s4 + $0x10] sm:$0xff]
  %v1480 = vld [vmem:[%s4 + $0x18] sm:$0xff]
  %v1481 = vld [vmem:[%s4 + $0x20] sm:$0xff]
  %v1482 = vld [vmem:[%s4 + $0x28] sm:$0xff]
  %v1483 = vld [vmem:[%s4 + $0x30] sm:$0xff]
  %v1484 = vld [vmem:[%s4 + $0x38] sm:$0xff]
  %v1485 = vld [vmem:[%s4 + $0x40] sm:$0xff]
  %v1486 = vld [vmem:[%s4 + $0x48] sm:$0xff]
  %v1487 = vld [vmem:[%s4 + $0x50] sm:$0xff]
  %v1488 = vld [vmem:[%s4 + $0x58] sm:$0xff]
  %v1489 = vld [vmem:[%s4 + $0x60] sm:$0xff]
  %v1490 = vld [vmem:[%s4 + $0x68] sm:$0xff]
  %v1491 = vld [vmem:[%s4 + $0x70] sm:$0xff]
  %v1492 = vld [vmem:[%s4 + $0x78] sm:$0xff]
  %v1493 = vld [vmem:[%s5] sm:$0x1]
  %v1495 = vlaneseq
  %v1496 = vshrl.u32 %v1495, 7
  %v1497 = vsub.s32 0, %v1496
  %v1498 = vrot.slane %v1493, %v1497
  %1500 = vmatprep.subr.mxu0 0.0
  %1501 = vmatpush1.msra.mxu0 %v1477
  %1502 = vmatprep.subr.mxu0 0.0
  %1503 = vmatpush1.msra.mxu0 %v1478
  %1504 = vmatprep.subr.mxu0 0.0
  %1505 = vmatpush1.msra.mxu0 %v1479
  %1506 = vmatprep.subr.mxu0 0.0
  %1507 = vmatpush1.msra.mxu0 %v1480
  %1508 = vmatprep.subr.mxu0 0.0
  %1509 = vmatpush1.msra.mxu0 %v1481
  %1510 = vmatprep.subr.mxu0 0.0
  %1511 = vmatpush1.msra.mxu0 %v1482
  %1512 = vmatprep.subr.mxu0 0.0
  %1513 = vmatpush1.msra.mxu0 %v1483
  %1514 = vmatprep.subr.mxu0 0.0
  %1515 = vmatpush1.msra.mxu0 %v1484
  %1516 = vmatprep.subr.mxu0 0.0
  %1517 = vmatpush1.msra.mxu0 %v1485
  %1518 = vmatprep.subr.mxu0 0.0
  %1519 = vmatpush1.msra.mxu0 %v1486
  %1520 = vmatprep.subr.mxu0 0.0
  %1521 = vmatpush1.msra.mxu0 %v1487
  %1522 = vmatprep.subr.mxu0 0.0
  %1523 = vmatpush1.msra.mxu0 %v1488
  %1524 = vmatprep.subr.mxu0 0.0
  %1525 = vmatpush1.msra.mxu0 %v1489
  %1526 = vmatprep.subr.mxu0 0.0
  %1527 = vmatpush1.msra.mxu0 %v1490
  %1528 = vmatprep.subr.mxu0 0.0
  %1529 = vmatpush1.msra.mxu0 %v1491
  %1530 = vmatprep.subr.mxu0 0.0
  %1531 = vmatpush1.msra.mxu0 %v1492
  %1532 = vmatprep.subr.mxu0 0.0
  %1533 = vmatpush1.msra.mxu0 0.0
  %1534 = vmatprep.subr.mxu0 0.0
  %1535 = vmatpush1.msra.mxu0 0.0
  %1536 = vmatprep.subr.mxu0 0.0
  %1537 = vmatpush1.msra.mxu0 0.0
  %1538 = vmatprep.subr.mxu0 0.0
  %1539 = vmatpush1.msra.mxu0 0.0
  %1540 = vmatprep.subr.mxu0 0.0
  %1541 = vmatpush1.msra.mxu0 0.0
  %1542 = vmatprep.subr.mxu0 0.0
  %1543 = vmatpush1.msra.mxu0 0.0
  %1544 = vmatprep.subr.mxu0 0.0
  %1545 = vmatpush1.msra.mxu0 0.0
  %1546 = vmatprep.subr.mxu0 0.0
  %1547 = vmatpush1.msra.mxu0 0.0
  %1548 = vmatprep.subr.mxu0 0.0
  %1549 = vmatpush1.msra.mxu0 0.0
  %1550 = vmatprep.subr.mxu0 0.0
  %1551 = vmatpush1.msra.mxu0 0.0
  %1552 = vmatprep.subr.mxu0 0.0
  %1553 = vmatpush1.msra.mxu0 0.0
  %1554 = vmatprep.subr.mxu0 0.0
  %1555 = vmatpush1.msra.mxu0 0.0
  %1556 = vmatprep.subr.mxu0 0.0
  %1557 = vmatpush1.msra.mxu0 0.0
  %1558 = vmatprep.subr.mxu0 0.0
  %1559 = vmatpush1.msra.mxu0 0.0
  %1560 = vmatprep.subr.mxu0 0.0
  %1561 = vmatpush1.msra.mxu0 0.0
  %1562 = vmatprep.subr.mxu0 0.0
  %1563 = vmatpush1.msra.mxu0 0.0
  %1564 = vmatprep.mubr.f32.mxu0 0.0
  %1565 = vmatmul.mubr.f32.gmra.mrb[0].mxu0 %v1476
  %v1566 = vpop.f32.mrb[0].mxu0
  %v1567 = vadd.f32 %v1498, %v1566
  %v1568 = vpop.f32.mrb[0].mxu0
  %1569 = vdwg.mxu0
  %v1570 = vxor.u32 %v1567, 2147483648
  %v1571 = vmul.f32 %v1570, 1.442695
  %v1572 = vpow.pop %v1571
  %v1573 = vadd.f32 %v1572, 1.0
  %v1574 = vrcp.pop %v1573
  %v1575 = vmul.f32 1.0, %v1574
  %1576 = vst [vmem:[%s6] sm:$0xff] %v1575
  // Predicated region
  $region26: #{_lambda_.9} parent=0 // pred_check
    _
  $region27: #{_lambda_.9} parent=0 // pred_check_branch
    %1578 = sbr.rel (0) target = $region29
  $region28: #{_lambda_.9} parent=0 // pred_region
    _
  $region29: #{_lambda_.9} parent=0 // pred_fallthru
    _
  // Predicated region
  $region30: #{_lambda_.9} parent=0 // pred_check
    _
  $region31: #{_lambda_.9} parent=0 // pred_check_branch
    %1580 = sbr.rel (0) target = $region33
  $region32: #{_lambda_.9} parent=0 // pred_region
    _
  $region33: #{_lambda_.9} parent=0 // pred_fallthru
    _

</llo_original>
